<compile_context>
chip_gen: v7x
topology: tpu7x:2x2x1
jax: 0.10.0
libtpu: 0.0.40
codegen_flags: <defaults>
</compile_context>

<pallas_src>
import jax
import jax.numpy as jnp
from jax.experimental import pallas as pl
from jax.experimental.pallas import tpu as pltpu


def meta_pos_kernel(len_ref, ebd_ref, feat_ref, wt_ref, w1a_ref, w1b_ref,
                    b1_ref, w2_ref, b2_ref, out_ref):
    Bb, T, De = ebd_ref.shape
    F0 = feat_ref.shape[-1]
    H = w1a_ref.shape[-1]

    ebd3 = ebd_ref[...]                                     # (Bb, T, De)  bf16
    e2d = ebd3.reshape(Bb * T, De)                          # flatten M for the MXU
    f2d = feat_ref[...].reshape(Bb * T, F0)                 # (Bb*T, F0)   bf16

    # meta_w_target feature: max_c |ebd @ w_target|
    proj = jnp.dot(e2d, wt_ref[...], preferred_element_type=jnp.float32)      # (Bb*T, C)
    w_feat = jnp.max(jnp.abs(proj), axis=-1, keepdims=True)                   # (Bb*T, 1)

    # Linear(F0+1 -> H) split at the w_target column (avoids a lane concat), then ReLU
    h = (jnp.dot(f2d, w1a_ref[...], preferred_element_type=jnp.float32)
         + w_feat * w1b_ref[...]
         + b1_ref[...])                                                        # (Bb*T, H)
    h = jnp.maximum(h, 0.0)

    # Linear(H -> 1) as VPU multiply + lane reduce (an N=1 MXU pass would waste the array)
    logit = jnp.sum(h.reshape(Bb, T, H) * w2_ref[...], axis=-1) + b2_ref[0, 0]  # (Bb, T)

    # numerically-stable variable-length softmax over T (T on the lane axis)
    lens = len_ref[...]                                      # (Bb, 1) int32
    col = jax.lax.broadcasted_iota(jnp.int32, (Bb, T), 1)
    valid = col < lens
    neg = jnp.float32(-1e30)
    logit_m = jnp.where(valid, logit, neg)
    m = jnp.max(logit_m, axis=-1, keepdims=True)              # (Bb, 1) masked max
    e = jnp.exp(logit_m - m)                                  # masked positions -> exp(-huge) = 0
    e = jnp.where(valid, e, 0.0)
    s = jnp.sum(e, axis=-1, keepdims=True)                    # (Bb, 1)
    score = e * pl.reciprocal(jnp.maximum(s, jnp.float32(1e-30)), approx=True)  # (Bb, T)

    # score-weighted sum of embeddings over T  ->  (Bb, De)  (lane/sublane-dense store)
    out_ref[...] = jnp.sum(ebd3.astype(jnp.float32) * score[..., None], axis=1)


def meta_forward(text_len, ebd, feat, w_target, w1, b1, w2, b2, *, bb=None):
    """META 'meta_mlp' forward.  ebd:(B,T,De) feat:(B,T,F0) w1:(F0+1,H) w2:(H,1) -> (B,De)."""
    B, T, De = ebd.shape
    F0 = feat.shape[-1]
    C = w_target.shape[-1]
    H = w1.shape[-1]

    # Block-batch size: Bb*T >= 256 (one full MXU pass on v6e/v7x; >=128 already fine on v5e),
    # Bb a multiple of 8 (sublane rule for non-full leading block dims), and keep the grid >= 2
    # steps when B allows so v7x megacore can shard the 'parallel' axis over both TensorCores.
    if bb is None:
        bb = -(-256 // T)
    bb = max(8, -(-bb // 8) * 8)
    bb = min(bb, max(8, -(-B // 8) * 8))        # don't over-pad tiny batches
    n_blocks = -(-B // bb)
    Bp = n_blocks * bb

    if Bp != B:
        pad = Bp - B
        ebd = jnp.pad(ebd, ((0, pad), (0, 0), (0, 0)))
        feat = jnp.pad(feat, ((0, pad), (0, 0), (0, 0)))
        text_len = jnp.pad(text_len, (0, pad))   # zero-length pad rows -> score 0, sliced off

    # bf16 for the streaming inputs + matmul weights (halves DMA bytes, f32 accumulation);
    # everything used in VPU/EUP elementwise code stays f32.
    ebd_bf = ebd.astype(jnp.bfloat16)
    feat_bf = feat.astype(jnp.bfloat16)
    wt_bf = w_target.astype(jnp.bfloat16)
    w1a = w1[:F0, :].astype(jnp.bfloat16)        # feature part of Linear(F0+1, H)
    w1b = w1[F0:, :].astype(jnp.float32)         # w_target-feature row (VPU multiply)
    b1f = b1.reshape(1, H).astype(jnp.float32)
    w2r = w2.reshape(1, H).astype(jnp.float32)   # row vector for VPU mul + lane reduce
    b2s = b2.reshape(1, 1).astype(jnp.float32)   # scalar -> SMEM
    lens2d = text_len.astype(jnp.int32).reshape(Bp, 1)

    grid_spec = pltpu.PrefetchScalarGridSpec(
        num_scalar_prefetch=0,
        grid=(n_blocks,),
        in_specs=[
            pl.BlockSpec((bb, 1), lambda g: (g, 0)),              # text_len   (int32)
            pl.BlockSpec((bb, T, De), lambda g: (g, 0, 0)),       # ebd        (bf16)
            pl.BlockSpec((bb, T, F0), lambda g: (g, 0, 0)),       # feat       (bf16)
            pl.BlockSpec((De, C), lambda g: (0, 0)),              # w_target   (bf16)
            pl.BlockSpec((F0, H), lambda g: (0, 0)),              # w1a        (bf16)
            pl.BlockSpec((1, H), lambda g: (0, 0)),               # w1b        (f32)
            pl.BlockSpec((1, H), lambda g: (0, 0)),               # b1         (f32)
            pl.BlockSpec((1, H), lambda g: (0, 0)),               # w2 row     (f32)
            pl.BlockSpec(memory_space=pltpu.MemorySpace.SMEM),    # b2 scalar  (f32)
        ],
        out_specs=pl.BlockSpec((bb, De), lambda g: (g, 0)),
    )
    out = pl.pallas_call(
        meta_pos_kernel,
        out_shape=jax.ShapeDtypeStruct((Bp, De), jnp.float32),
        grid_spec=grid_spec,
        compiler_params=pltpu.CompilerParams(dimension_semantics=("parallel",)),
    )(lens2d, ebd_bf, feat_bf, wt_bf, w1a, w1b, b1f, w2r, b2s)
    return out[:B]                               # (B, De)


if __name__ == "__main__":
    key = jax.random.PRNGKey(0)
    B, T, De, C, H = 32, 16, 32, 8, 50
    vocab = 20
    pos_max_len, pos_dim = 16, 8
    keys = jax.random.split(key, 14)

    # ---- synthetic data (what the PyTorch `data` dict would carry) ----
    text = jax.random.randint(keys[0], (B, T), 0, vocab)                       # (B, T) token ids
    text_len = jax.random.randint(keys[1], (B,), 4, T + 1).astype(jnp.int32)
    text_len = text_len.at[0].set(T)                                           # max(text_len) == T
    head = jnp.sort(jax.random.randint(keys[2], (B, 2), 0, T), axis=1).astype(jnp.int32)
    tail = jnp.sort(jax.random.randint(keys[3], (B, 2), 0, T), axis=1).astype(jnp.int32)
    idf_table = jax.random.uniform(keys[4], (vocab, 1), jnp.float32)           # data['idf']
    iwf_table = jax.random.uniform(keys[5], (vocab, 1), jnp.float32)           # data['iwf']
    w_target = jax.random.normal(keys[6], (De, C), jnp.float32) * 0.1          # data['w_target']

    # ---- deterministic parameters ----
    word_ebd = jax.random.normal(keys[7], (vocab, De), jnp.float32) * 0.1      # self.ebd
    pos1_tab = (jax.random.normal(keys[8], (2 * pos_max_len, pos_dim), jnp.float32) * 0.1
                ).at[0].set(0.0)                                               # padding_idx=0
    pos2_tab = (jax.random.normal(keys[9], (2 * pos_max_len, pos_dim), jnp.float32) * 0.1
                ).at[0].set(0.0)
    F0 = 2 * pos_dim + 1 + 1                                                   # 18; MLP input 19
    W1 = jax.random.normal(keys[10], (F0 + 1, H), jnp.float32) * 0.1           # Linear(19, 50)
    b1 = jax.random.normal(keys[11], (1, H), jnp.float32) * 0.1
    W2 = jax.random.normal(keys[12], (H, 1), jnp.float32) * 0.1                # Linear(50, 1)
    b2 = jax.random.normal(keys[13], (1, 1), jnp.float32) * 0.1

    # ---- POS forward (index arithmetic + pos1/pos2 embedding gathers) + idf/iwf gathers (JAX glue) ----
    ebd = word_ebd[text]                                                       # (B, T, De)
    idx = jnp.arange(T, dtype=jnp.int32)[None, :]
    h0, h1 = head[:, 0:1], head[:, 1:2]
    t0, t1 = tail[:, 0:1], tail[:, 1:2]
    pos1 = jnp.where(idx < h0, idx - h0, 0) + jnp.where(idx > h1, idx - h1, 0) + pos_max_len
    pos2 = jnp.where(idx < t0, idx - t0, 0) + jnp.where(idx > t1, idx - t1, 0) + pos_max_len
    feat = jnp.concatenate(
        [pos1_tab[pos1], pos2_tab[pos2], idf_table[text], iwf_table[text]],
        axis=-1).astype(jnp.float32)                                           # (B, T, 18)

    out = meta_forward(text_len, ebd, feat, w_target, W1, b1, W2, b2)
    out = jax.block_until_ready(out)

    # ---- pure-JAX reference (mirrors the PyTorch forward, on the same bf16-rounded streams) ----
    ebd_r = ebd.astype(jnp.bfloat16).astype(jnp.float32)
    feat_r = feat.astype(jnp.bfloat16).astype(jnp.float32)
    wt_r = w_target.astype(jnp.bfloat16).astype(jnp.float32)
    w1a_r = W1[:F0].astype(jnp.bfloat16).astype(jnp.float32)
    wproj = jnp.abs(jnp.einsum('btd,dc->btc', ebd_r, wt_r)).max(-1, keepdims=True)
    hid = jnp.maximum(jnp.einsum('btf,fh->bth', feat_r, w1a_r)
                      + wproj * W1[F0:][None] + b1[None], 0.0)
    logit = (jnp.einsum('bth,ho->bto', hid, W2) + b2[None])[..., 0]            # (B, T)
    mask = jnp.arange(T)[None, :] < text_len[:, None]
    logit_m = jnp.where(mask, logit, -jnp.inf)
    e = jnp.where(mask, jnp.exp(logit_m - logit_m.max(axis=1, keepdims=True)), 0.0)
    score = e / jnp.sum(e, axis=1, keepdims=True)
    ref = jnp.sum(ebd_r * score[..., None], axis=1)                            # (B, De)

    assert out.shape == (B, De)
    assert jnp.allclose(out, ref, rtol=2e-2, atol=2e-2), float(jnp.max(jnp.abs(out - ref)))
    print("KERNEL_OK")
</pallas_src>

<mosaic_0001>
module attributes {stable_mosaic.version = 11 : i64} {
  func.func @meta_pos_kernel(%arg0: i32, %arg1: memref<16x1xi32, #tpu.memory_space<vmem>>, %arg2: memref<16x16x32xbf16, #tpu.memory_space<vmem>>, %arg3: memref<16x16x18xbf16, #tpu.memory_space<vmem>>, %arg4: memref<32x8xbf16, #tpu.memory_space<vmem>>, %arg5: memref<18x50xbf16, #tpu.memory_space<vmem>>, %arg6: memref<1x50xf32, #tpu.memory_space<vmem>>, %arg7: memref<1x50xf32, #tpu.memory_space<vmem>>, %arg8: memref<1x50xf32, #tpu.memory_space<vmem>>, %arg9: memref<1x1xf32, #tpu.memory_space<smem>>, %arg10: memref<16x32xf32, #tpu.memory_space<vmem>>) attributes {dimension_semantics = [#tpu.dimension_semantics<parallel>], iteration_bounds = array<i64: 2>, scalar_prefetch = 0 : i64, scratch_operands = 0 : i64, tpu.core_type = #tpu.core_type<tc>, window_params = [{transform_indices = @transform_0, window_bounds = array<i64: 16, 1>}, {transform_indices = @transform_1, window_bounds = array<i64: 16, 16, 32>}, {transform_indices = @transform_2, window_bounds = array<i64: 16, 16, 18>}, {pipeline_mode = #tpu.pipeline_mode<synchronous>, transform_indices = @transform_3, window_bounds = array<i64: 32, 8>}, {pipeline_mode = #tpu.pipeline_mode<synchronous>, transform_indices = @transform_4, window_bounds = array<i64: 18, 50>}, {pipeline_mode = #tpu.pipeline_mode<synchronous>, transform_indices = @transform_5, window_bounds = array<i64: 1, 50>}, {pipeline_mode = #tpu.pipeline_mode<synchronous>, transform_indices = @transform_6, window_bounds = array<i64: 1, 50>}, {pipeline_mode = #tpu.pipeline_mode<synchronous>, transform_indices = @transform_7, window_bounds = array<i64: 1, 50>}, {transform_indices = @transform_8, window_bounds = array<i64: 1, 1>}, {transform_indices = @transform_9, window_bounds = array<i64: 16, 32>}]} {
    %c0 = arith.constant 0 : index
    %c0_0 = arith.constant 0 : index
    %c0_1 = arith.constant 0 : index
    %0 = vector.load %arg2[%c0, %c0_0, %c0_1] : memref<16x16x32xbf16, #tpu.memory_space<vmem>>, vector<16x16x32xbf16>
    %1 = vector.shape_cast %0 : vector<16x16x32xbf16> to vector<256x32xbf16>
    %c0_2 = arith.constant 0 : index
    %c0_3 = arith.constant 0 : index
    %c0_4 = arith.constant 0 : index
    %2 = vector.load %arg3[%c0_2, %c0_3, %c0_4] : memref<16x16x18xbf16, #tpu.memory_space<vmem>>, vector<16x16x18xbf16>
    %3 = vector.shape_cast %2 : vector<16x16x18xbf16> to vector<256x18xbf16>
    %c0_5 = arith.constant 0 : index
    %c0_6 = arith.constant 0 : index
    %4 = vector.load %arg4[%c0_5, %c0_6] : memref<32x8xbf16, #tpu.memory_space<vmem>>, vector<32x8xbf16>
    %cst = arith.constant dense<0.000000e+00> : vector<256x8xf32>
    %5 = tpu.matmul %1, %4, %cst {dimension_numbers = #tpu.dot_dimension_numbers<[1], [0], [0], [1], [0, 0, 1, 1], [], []>} : vector<256x32xbf16>, vector<32x8xbf16>, vector<256x8xf32> -> vector<256x8xf32>
    %6 = math.absf %5 : vector<256x8xf32>
    %cst_7 = arith.constant dense<0xFF800000> : vector<256xf32>
    %7 = vector.multi_reduction <maximumf>, %6, %cst_7 [1] : vector<256x8xf32> to vector<256xf32>
    %8 = vector.shape_cast %7 : vector<256xf32> to vector<256x1xf32>
    %c0_8 = arith.constant 0 : index
    %c0_9 = arith.constant 0 : index
    %9 = vector.load %arg5[%c0_8, %c0_9] : memref<18x50xbf16, #tpu.memory_space<vmem>>, vector<18x50xbf16>
    %cst_10 = arith.constant dense<0.000000e+00> : vector<256x50xf32>
    %10 = tpu.matmul %3, %9, %cst_10 {dimension_numbers = #tpu.dot_dimension_numbers<[1], [0], [0], [1], [0, 0, 1, 1], [], []>} : vector<256x18xbf16>, vector<18x50xbf16>, vector<256x50xf32> -> vector<256x50xf32>
    %c0_11 = arith.constant 0 : index
    %c0_12 = arith.constant 0 : index
    %11 = vector.load %arg6[%c0_11, %c0_12] : memref<1x50xf32, #tpu.memory_space<vmem>>, vector<1x50xf32>
    %12 = vector.broadcast %8 : vector<256x1xf32> to vector<256x50xf32>
    %13 = vector.broadcast %11 : vector<1x50xf32> to vector<256x50xf32>
    %14 = arith.mulf %12, %13 : vector<256x50xf32>
    %15 = arith.addf %10, %14 : vector<256x50xf32>
    %c0_13 = arith.constant 0 : index
    %c0_14 = arith.constant 0 : index
    %16 = vector.load %arg7[%c0_13, %c0_14] : memref<1x50xf32, #tpu.memory_space<vmem>>, vector<1x50xf32>
    %17 = vector.broadcast %16 : vector<1x50xf32> to vector<256x50xf32>
    %18 = arith.addf %15, %17 : vector<256x50xf32>
    %cst_15 = arith.constant 0.000000e+00 : f32
    %19 = vector.broadcast %cst_15 : f32 to vector<256x50xf32>
    %20 = arith.maximumf %18, %19 : vector<256x50xf32>
    %21 = vector.shape_cast %20 : vector<256x50xf32> to vector<16x16x50xf32>
    %c0_16 = arith.constant 0 : index
    %c0_17 = arith.constant 0 : index
    %22 = vector.load %arg8[%c0_16, %c0_17] : memref<1x50xf32, #tpu.memory_space<vmem>>, vector<1x50xf32>
    %23 = vector.shape_cast %22 : vector<1x50xf32> to vector<1x1x50xf32>
    %24 = vector.broadcast %23 : vector<1x1x50xf32> to vector<16x16x50xf32>
    %25 = arith.mulf %21, %24 : vector<16x16x50xf32>
    %cst_18 = arith.constant dense<0.000000e+00> : vector<16x16xf32>
    %26 = vector.multi_reduction <add>, %25, %cst_18 [2] : vector<16x16x50xf32> to vector<16x16xf32>
    %c0_19 = arith.constant 0 : index
    %c0_20 = arith.constant 0 : index
    %27 = memref.load %arg9[%c0_19, %c0_20] : memref<1x1xf32, #tpu.memory_space<smem>>
    %28 = vector.broadcast %27 : f32 to vector<16x16xf32>
    %29 = arith.addf %26, %28 : vector<16x16xf32>
    %c0_21 = arith.constant 0 : index
    %c0_22 = arith.constant 0 : index
    %30 = vector.load %arg1[%c0_21, %c0_22] : memref<16x1xi32, #tpu.memory_space<vmem>>, vector<16x1xi32>
    %31 = tpu.iota {dimensions = array<i32: 1>} : vector<16x16xi32>
    %32 = vector.broadcast %30 : vector<16x1xi32> to vector<16x16xi32>
    %33 = arith.cmpi slt, %31, %32 : vector<16x16xi32>
    %cst_23 = arith.constant -1.000000e+30 : f32
    %34 = vector.broadcast %cst_23 : f32 to vector<16x16xf32>
    %35 = arith.select %33, %29, %34 : vector<16x16xi1>, vector<16x16xf32>
    %cst_24 = arith.constant dense<0xFF800000> : vector<16xf32>
    %36 = vector.multi_reduction <maximumf>, %35, %cst_24 [1] : vector<16x16xf32> to vector<16xf32>
    %37 = vector.shape_cast %36 : vector<16xf32> to vector<16x1xf32>
    %38 = vector.broadcast %37 : vector<16x1xf32> to vector<16x16xf32>
    %39 = arith.subf %35, %38 : vector<16x16xf32>
    %40 = math.exp %39 : vector<16x16xf32>
    %cst_25 = arith.constant 0.000000e+00 : f32
    %41 = vector.broadcast %cst_25 : f32 to vector<16x16xf32>
    %42 = arith.select %33, %40, %41 : vector<16x16xi1>, vector<16x16xf32>
    %cst_26 = arith.constant dense<0.000000e+00> : vector<16xf32>
    %43 = vector.multi_reduction <add>, %42, %cst_26 [1] : vector<16x16xf32> to vector<16xf32>
    %44 = vector.shape_cast %43 : vector<16xf32> to vector<16x1xf32>
    %cst_27 = arith.constant 1.000000e-30 : f32
    %45 = vector.broadcast %cst_27 : f32 to vector<16x1xf32>
    %46 = arith.maximumf %44, %45 : vector<16x1xf32>
    %47 = tpu.reciprocal %46 {approx = true} : vector<16x1xf32> -> vector<16x1xf32>
    %48 = vector.broadcast %47 : vector<16x1xf32> to vector<16x16xf32>
    %49 = arith.mulf %42, %48 : vector<16x16xf32>
    %50 = arith.extf %0 : vector<16x16x32xbf16> to vector<16x16x32xf32>
    %51 = vector.shape_cast %49 : vector<16x16xf32> to vector<16x16x1xf32>
    %52 = vector.broadcast %51 : vector<16x16x1xf32> to vector<16x16x32xf32>
    %53 = arith.mulf %50, %52 : vector<16x16x32xf32>
    %cst_28 = arith.constant dense<0.000000e+00> : vector<16x32xf32>
    %54 = vector.multi_reduction <add>, %53, %cst_28 [1] : vector<16x16x32xf32> to vector<16x32xf32>
    %c0_29 = arith.constant 0 : index
    %c0_30 = arith.constant 0 : index
    %55 = vector.load %arg10[%c0_29, %c0_30] : memref<16x32xf32, #tpu.memory_space<vmem>>, vector<16x32xf32>
    tpu.vector_store %arg10[%c0_29, %c0_30], %54 {strides = array<i32>} : memref<16x32xf32, #tpu.memory_space<vmem>>, vector<16x32xf32>,
    return
  }
  func.func @transform_0(%arg0: i32) -> (i32, i32) {
    %c0_i32 = arith.constant 0 : i32
    %c0_i32_0 = arith.constant 0 : i32
    return %arg0, %c0_i32 : i32, i32
  }
  func.func @transform_1(%arg0: i32) -> (i32, i32, i32) {
    %c0_i32 = arith.constant 0 : i32
    %c0_i32_0 = arith.constant 0 : i32
    %c0_i32_1 = arith.constant 0 : i32
    return %arg0, %c0_i32, %c0_i32_0 : i32, i32, i32
  }
  func.func @transform_2(%arg0: i32) -> (i32, i32, i32) {
    %c0_i32 = arith.constant 0 : i32
    %c0_i32_0 = arith.constant 0 : i32
    %c0_i32_1 = arith.constant 0 : i32
    return %arg0, %c0_i32, %c0_i32_0 : i32, i32, i32
  }
  func.func @transform_3(%arg0: i32) -> (i32, i32) {
    %c0_i32 = arith.constant 0 : i32
    %c0_i32_0 = arith.constant 0 : i32
    %c0_i32_1 = arith.constant 0 : i32
    return %c0_i32, %c0_i32_0 : i32, i32
  }
  func.func @transform_4(%arg0: i32) -> (i32, i32) {
    %c0_i32 = arith.constant 0 : i32
    %c0_i32_0 = arith.constant 0 : i32
    %c0_i32_1 = arith.constant 0 : i32
    return %c0_i32, %c0_i32_0 : i32, i32
  }
  func.func @transform_5(%arg0: i32) -> (i32, i32) {
    %c0_i32 = arith.constant 0 : i32
    %c0_i32_0 = arith.constant 0 : i32
    %c0_i32_1 = arith.constant 0 : i32
    return %c0_i32, %c0_i32_0 : i32, i32
  }
  func.func @transform_6(%arg0: i32) -> (i32, i32) {
    %c0_i32 = arith.constant 0 : i32
    %c0_i32_0 = arith.constant 0 : i32
    %c0_i32_1 = arith.constant 0 : i32
    return %c0_i32, %c0_i32_0 : i32, i32
  }
  func.func @transform_7(%arg0: i32) -> (i32, i32) {
    %c0_i32 = arith.constant 0 : i32
    %c0_i32_0 = arith.constant 0 : i32
    %c0_i32_1 = arith.constant 0 : i32
    return %c0_i32, %c0_i32_0 : i32, i32
  }
  func.func @transform_8(%arg0: i32) -> (i32, i32) {
    %c0_i32 = arith.constant 0 : i32
    %c0_i32_0 = arith.constant 0 : i32
    %c0_i32_1 = arith.constant 0 : i32
    return %c0_i32, %c0_i32_0 : i32, i32
  }
  func.func @transform_9(%arg0: i32) -> (i32, i32) {
    %c0_i32 = arith.constant 0 : i32
    %c0_i32_0 = arith.constant 0 : i32
    return %arg0, %c0_i32 : i32, i32
  }
}

</mosaic_0001>

<llo_original>
// kernel: tpu_custom_call.1
$region0: #{tpu_custom_call.1}
  #allocation0 [shape = 'u32[]', space=smem, size = 0x4, offset = 0x4, fixed_abs, tag = 'smem constant byte address 0x4 - core index']
  #allocation1 [shape = 'u32[144,128]{1,0:T(1,128)}', space=vmem, size = 0x12000, scoped, tag = 'internal scratch']
  #allocation2 [shape = 'f32[1,1]{1,0:T(1,128)S(6)}', space=smem, size = 0x200, scoped, tag = 'scoped memory for tpu_custom_call.1']
  %s0 = inlined_call_operand.vmem [shape: s32[32,1], index: 0, kind: input, shape index: {}]
  %s1 = inlined_call_operand.vmem [shape: bf16[32,16,32], index: 1, kind: input, shape index: {}]
  %s2 = inlined_call_operand.vmem [shape: bf16[32,16,18], index: 2, kind: input, shape index: {}]
  %s3 = inlined_call_operand.vmem [shape: bf16[32,8], index: 3, kind: input, shape index: {}]
  %s4 = inlined_call_operand.vmem [shape: bf16[18,50], index: 4, kind: input, shape index: {}]
  %s5 = inlined_call_operand.vmem [shape: f32[1,50], index: 5, kind: input, shape index: {}]
  %s6 = inlined_call_operand.vmem [shape: f32[1,50], index: 6, kind: input, shape index: {}]
  %s7 = inlined_call_operand.vmem [shape: f32[1,50], index: 7, kind: input, shape index: {}]
  %s8 = inlined_call_operand.<no memory space> [shape: f32[1,1], index: 8, kind: input, shape index: {}]
  %s9 = inlined_call_operand.hbm [shape: f32[32,32], index: 9, kind: output, shape index: {}]
  %s10 = sld [smem:[#allocation0]]
  $region69: #{tpu_custom_call.1} parent=0
    _
  %s12 = ssub.s32 1, %s10
  %s13 = scalar_select 0, %s12, %s10
  %14 = sst [smem:[#allocation2]] %s8
  $region1: #{tpu_custom_call.1} parent=0
    #allocation3 [shape = 'u8[16384]{0}', space=vmem, size = 0x4000, scoped, tag = 'output window, operand 0']
    #allocation4 [shape = 's32[2]{0}', space=sflag, size = 0x8, scoped, tag = 'scoped memory for tpu_custom_call.1']
    %15 = vsyncpa [#allocation4], 0
    %s16 = scalar_lea.sflag [#allocation4], 1
    %17 = vsyncpa %s16, 0
    loop: start=0, step=1, limit=4
    $region2: #{tpu_custom_call.1} parent=1 // loop_pre_header
      _
    $region3: #{tpu_custom_call.1} parent=1 // loop_header
      %s19 = sphi 0, %s23
      %p20 = scmp.ge.s32.totalorder %s19, 4
      %s29 = sphi 0, %s31
      %s32 = sphi 0, %s29
      %s33 = sphi 0, %s32
      %s49 = sphi 0, %s33
      %s55 = sphi 0, %s57
      %s58 = sphi 0, %s55
      %s59 = sphi 0, %s58
      %s75 = sphi 0, %s59
      %s81 = sphi 0, %s83
      %s84 = sphi 0, %s81
      %s85 = sphi 0, %s84
      %s101 = sphi 0, %s85
      %s105 = sphi 0, %s105
      %s107 = sphi 0, %s105
      %s108 = sphi 0, %s107
      %s122 = sphi 0, %s108
      %s126 = sphi 0, %s126
      %s128 = sphi 0, %s126
      %s129 = sphi 0, %s128
      %s143 = sphi 0, %s129
      %s147 = sphi 0, %s147
      %s149 = sphi 0, %s147
      %s150 = sphi 0, %s149
      %s164 = sphi 0, %s150
      %s168 = sphi 0, %s168
      %s170 = sphi 0, %s168
      %s171 = sphi 0, %s170
      %s185 = sphi 0, %s171
      %s189 = sphi 0, %s189
      %s191 = sphi 0, %s189
      %s192 = sphi 0, %s191
      %s206 = sphi 0, %s192
      %s210 = sphi 0, %s210
      %s212 = sphi 0, %s210
      %s213 = sphi 0, %s212
      %s227 = sphi 0, %s213
      %s233 = sphi 0, %s235
      %s236 = sphi 0, %s233
      %s237 = sphi 0, %s236
      %s253 = sphi 0, %s237
    $region4: #{tpu_custom_call.1} parent=1 // loop_header_branch
      %22 = sbr.rel (%p20) target = $region8
    $region5: #{tpu_custom_call.1} parent=1 // loop_body
      %s24 = ssub.s32 %s19, 1
      %s25 = ssub.s32 %s19, 2
      %s26 = sadd.s32 %s19, 1
      %s27 = ssub.s32 %s19, %s26
      %p28 = scmp.eq.s32.totalorder %s27, 0
      %s30 = sadd.s32 %s29, 1
      %s31 = scalar_select %p28, %s29, %s30
      %p34 = pneg %p28
      %p35 = scmp.eq.s32.totalorder %s19, 1
      %p36 = por %p34, %p35
      %p37 = scmp.ne.s32.totalorder %s29, %s32
      %p38 = scmp.eq.s32.totalorder %s19, 0
      %p39 = por %p37, %p38
      %p40 = scmp.ne.s32.totalorder %s29, %s32
      %p41 = scmp.eq.s32.totalorder %s24, 1
      %p42 = por %p40, %p41
      %p43 = scmp.ne.s32.totalorder %s32, %s33
      %p44 = scmp.eq.s32.totalorder %s24, 0
      %p45 = por %p43, %p44
      %p46 = scmp.ne.s32.totalorder %s32, %s33
      %p47 = scmp.eq.s32.totalorder %s25, 1
      %p48 = por %p46, %p47
      %p50 = scmp.ne.s32.totalorder %s33, %s49
      %p51 = scmp.eq.s32.totalorder %s25, 0
      %p52 = por %p50, %p51
      %s53 = ssub.s32 %s19, %s26
      %p54 = scmp.eq.s32.totalorder %s53, 0
      %s56 = sadd.s32 %s55, 1
      %s57 = scalar_select %p54, %s55, %s56
      %p60 = pneg %p54
      %p61 = scmp.eq.s32.totalorder %s19, 1
      %p62 = por %p60, %p61
      %p63 = scmp.ne.s32.totalorder %s55, %s58
      %p64 = scmp.eq.s32.totalorder %s19, 0
      %p65 = por %p63, %p64
      %p66 = scmp.ne.s32.totalorder %s55, %s58
      %p67 = scmp.eq.s32.totalorder %s24, 1
      %p68 = por %p66, %p67
      %p69 = scmp.ne.s32.totalorder %s58, %s59
      %p70 = scmp.eq.s32.totalorder %s24, 0
      %p71 = por %p69, %p70
      %p72 = scmp.ne.s32.totalorder %s58, %s59
      %p73 = scmp.eq.s32.totalorder %s25, 1
      %p74 = por %p72, %p73
      %p76 = scmp.ne.s32.totalorder %s59, %s75
      %p77 = scmp.eq.s32.totalorder %s25, 0
      %p78 = por %p76, %p77
      %s79 = ssub.s32 %s19, %s26
      %p80 = scmp.eq.s32.totalorder %s79, 0
      %s82 = sadd.s32 %s81, 1
      %s83 = scalar_select %p80, %s81, %s82
      %p86 = pneg %p80
      %p87 = scmp.eq.s32.totalorder %s19, 1
      %p88 = por %p86, %p87
      %p89 = scmp.ne.s32.totalorder %s81, %s84
      %p90 = scmp.eq.s32.totalorder %s19, 0
      %p91 = por %p89, %p90
      %p92 = scmp.ne.s32.totalorder %s81, %s84
      %p93 = scmp.eq.s32.totalorder %s24, 1
      %p94 = por %p92, %p93
      %p95 = scmp.ne.s32.totalorder %s84, %s85
      %p96 = scmp.eq.s32.totalorder %s24, 0
      %p97 = por %p95, %p96
      %p98 = scmp.ne.s32.totalorder %s84, %s85
      %p99 = scmp.eq.s32.totalorder %s25, 1
      %p100 = por %p98, %p99
      %p102 = scmp.ne.s32.totalorder %s85, %s101
      %p103 = scmp.eq.s32.totalorder %s25, 0
      %p104 = por %p102, %p103
      %s106 = sadd.s32 %s105, 1
      %p109 = scmp.eq.s32.totalorder %s19, 1
      %p110 = scmp.ne.s32.totalorder %s105, %s107
      %p111 = scmp.eq.s32.totalorder %s19, 0
      %p112 = por %p110, %p111
      %p113 = scmp.ne.s32.totalorder %s105, %s107
      %p114 = scmp.eq.s32.totalorder %s24, 1
      %p115 = por %p113, %p114
      %p116 = scmp.ne.s32.totalorder %s107, %s108
      %p117 = scmp.eq.s32.totalorder %s24, 0
      %p118 = por %p116, %p117
      %p119 = scmp.ne.s32.totalorder %s107, %s108
      %p120 = scmp.eq.s32.totalorder %s25, 1
      %p121 = por %p119, %p120
      %p123 = scmp.ne.s32.totalorder %s108, %s122
      %p124 = scmp.eq.s32.totalorder %s25, 0
      %p125 = por %p123, %p124
      %s127 = sadd.s32 %s126, 1
      %p130 = scmp.eq.s32.totalorder %s19, 1
      %p131 = scmp.ne.s32.totalorder %s126, %s128
      %p132 = scmp.eq.s32.totalorder %s19, 0
      %p133 = por %p131, %p132
      %p134 = scmp.ne.s32.totalorder %s126, %s128
      %p135 = scmp.eq.s32.totalorder %s24, 1
      %p136 = por %p134, %p135
      %p137 = scmp.ne.s32.totalorder %s128, %s129
      %p138 = scmp.eq.s32.totalorder %s24, 0
      %p139 = por %p137, %p138
      %p140 = scmp.ne.s32.totalorder %s128, %s129
      %p141 = scmp.eq.s32.totalorder %s25, 1
      %p142 = por %p140, %p141
      %p144 = scmp.ne.s32.totalorder %s129, %s143
      %p145 = scmp.eq.s32.totalorder %s25, 0
      %p146 = por %p144, %p145
      %s148 = sadd.s32 %s147, 1
      %p151 = scmp.eq.s32.totalorder %s19, 1
      %p152 = scmp.ne.s32.totalorder %s147, %s149
      %p153 = scmp.eq.s32.totalorder %s19, 0
      %p154 = por %p152, %p153
      %p155 = scmp.ne.s32.totalorder %s147, %s149
      %p156 = scmp.eq.s32.totalorder %s24, 1
      %p157 = por %p155, %p156
      %p158 = scmp.ne.s32.totalorder %s149, %s150
      %p159 = scmp.eq.s32.totalorder %s24, 0
      %p160 = por %p158, %p159
      %p161 = scmp.ne.s32.totalorder %s149, %s150
      %p162 = scmp.eq.s32.totalorder %s25, 1
      %p163 = por %p161, %p162
      %p165 = scmp.ne.s32.totalorder %s150, %s164
      %p166 = scmp.eq.s32.totalorder %s25, 0
      %p167 = por %p165, %p166
      %s169 = sadd.s32 %s168, 1
      %p172 = scmp.eq.s32.totalorder %s19, 1
      %p173 = scmp.ne.s32.totalorder %s168, %s170
      %p174 = scmp.eq.s32.totalorder %s19, 0
      %p175 = por %p173, %p174
      %p176 = scmp.ne.s32.totalorder %s168, %s170
      %p177 = scmp.eq.s32.totalorder %s24, 1
      %p178 = por %p176, %p177
      %p179 = scmp.ne.s32.totalorder %s170, %s171
      %p180 = scmp.eq.s32.totalorder %s24, 0
      %p181 = por %p179, %p180
      %p182 = scmp.ne.s32.totalorder %s170, %s171
      %p183 = scmp.eq.s32.totalorder %s25, 1
      %p184 = por %p182, %p183
      %p186 = scmp.ne.s32.totalorder %s171, %s185
      %p187 = scmp.eq.s32.totalorder %s25, 0
      %p188 = por %p186, %p187
      %s190 = sadd.s32 %s189, 1
      %p193 = scmp.eq.s32.totalorder %s19, 1
      %p194 = scmp.ne.s32.totalorder %s189, %s191
      %p195 = scmp.eq.s32.totalorder %s19, 0
      %p196 = por %p194, %p195
      %p197 = scmp.ne.s32.totalorder %s189, %s191
      %p198 = scmp.eq.s32.totalorder %s24, 1
      %p199 = por %p197, %p198
      %p200 = scmp.ne.s32.totalorder %s191, %s192
      %p201 = scmp.eq.s32.totalorder %s24, 0
      %p202 = por %p200, %p201
      %p203 = scmp.ne.s32.totalorder %s191, %s192
      %p204 = scmp.eq.s32.totalorder %s25, 1
      %p205 = por %p203, %p204
      %p207 = scmp.ne.s32.totalorder %s192, %s206
      %p208 = scmp.eq.s32.totalorder %s25, 0
      %p209 = por %p207, %p208
      %s211 = sadd.s32 %s210, 1
      %p214 = scmp.eq.s32.totalorder %s19, 1
      %p215 = scmp.ne.s32.totalorder %s210, %s212
      %p216 = scmp.eq.s32.totalorder %s19, 0
      %p217 = por %p215, %p216
      %p218 = scmp.ne.s32.totalorder %s210, %s212
      %p219 = scmp.eq.s32.totalorder %s24, 1
      %p220 = por %p218, %p219
      %p221 = scmp.ne.s32.totalorder %s212, %s213
      %p222 = scmp.eq.s32.totalorder %s24, 0
      %p223 = por %p221, %p222
      %p224 = scmp.ne.s32.totalorder %s212, %s213
      %p225 = scmp.eq.s32.totalorder %s25, 1
      %p226 = por %p224, %p225
      %p228 = scmp.ne.s32.totalorder %s213, %s227
      %p229 = scmp.eq.s32.totalorder %s25, 0
      %p230 = por %p228, %p229
      %s231 = ssub.s32 %s19, %s26
      %p232 = scmp.eq.s32.totalorder %s231, 0
      %s234 = sadd.s32 %s233, 1
      %s235 = scalar_select %p232, %s233, %s234
      %p238 = pneg %p232
      %p239 = scmp.eq.s32.totalorder %s19, 1
      %p240 = por %p238, %p239
      %p241 = scmp.ne.s32.totalorder %s233, %s236
      %p242 = scmp.eq.s32.totalorder %s19, 0
      %p243 = por %p241, %p242
      %p244 = scmp.ne.s32.totalorder %s233, %s236
      %p245 = scmp.eq.s32.totalorder %s24, 1
      %p246 = por %p244, %p245
      %p247 = scmp.ne.s32.totalorder %s236, %s237
      %p248 = scmp.eq.s32.totalorder %s24, 0
      %p249 = por %p247, %p248
      %p250 = scmp.ne.s32.totalorder %s236, %s237
      %p251 = scmp.eq.s32.totalorder %s25, 1
      %p252 = por %p250, %p251
      %p254 = scmp.ne.s32.totalorder %s237, %s253
      %p255 = scmp.eq.s32.totalorder %s25, 0
      %p256 = por %p254, %p255
      %p257 = scmp.le.s32.totalorder 1, %s19
      %p258 = scmp.lt.s32.totalorder %s19, 3
      %p259 = pnand %p257, %p258
      %p260 = pneg %p259
      // Predicated region
      $region9: #{tpu_custom_call.1} parent=5 // pred_check
        _
      $region10: #{tpu_custom_call.1} parent=5 // pred_check_branch
        %262 = sbr.rel (%p259) target = $region12
      $region11: #{tpu_custom_call.1} parent=5 // pred_region
        %s263 = ssub.s32 %s19, 1
        // Predicated region
        $region13: #{tpu_custom_call.1} parent=11 // pred_check
          %p264 = pneg %p118
        $region14: #{tpu_custom_call.1} parent=11 // pred_check_branch
          %266 = sbr.rel (%p264) target = $region16
        $region15: #{tpu_custom_call.1} parent=11 // pred_region
          _
        $region16: #{tpu_custom_call.1} parent=11 // pred_fallthru
          _
        // Predicated region
        $region17: #{tpu_custom_call.1} parent=11 // pred_check
          %p267 = pneg %p139
        $region18: #{tpu_custom_call.1} parent=11 // pred_check_branch
          %269 = sbr.rel (%p267) target = $region20
        $region19: #{tpu_custom_call.1} parent=11 // pred_region
          _
        $region20: #{tpu_custom_call.1} parent=11 // pred_fallthru
          _
        // Predicated region
        $region21: #{tpu_custom_call.1} parent=11 // pred_check
          %p270 = pneg %p160
        $region22: #{tpu_custom_call.1} parent=11 // pred_check_branch
          %272 = sbr.rel (%p270) target = $region24
        $region23: #{tpu_custom_call.1} parent=11 // pred_region
          _
        $region24: #{tpu_custom_call.1} parent=11 // pred_fallthru
          _
        // Predicated region
        $region25: #{tpu_custom_call.1} parent=11 // pred_check
          %p273 = pneg %p181
        $region26: #{tpu_custom_call.1} parent=11 // pred_check_branch
          %275 = sbr.rel (%p273) target = $region28
        $region27: #{tpu_custom_call.1} parent=11 // pred_region
          _
        $region28: #{tpu_custom_call.1} parent=11 // pred_fallthru
          _
        // Predicated region
        $region29: #{tpu_custom_call.1} parent=11 // pred_check
          %p276 = pneg %p202
        $region30: #{tpu_custom_call.1} parent=11 // pred_check_branch
          %278 = sbr.rel (%p276) target = $region32
        $region31: #{tpu_custom_call.1} parent=11 // pred_region
          _
        $region32: #{tpu_custom_call.1} parent=11 // pred_fallthru
          _
        // Predicated region
        $region33: #{tpu_custom_call.1} parent=11 // pred_check
          %p279 = pneg %p223
        $region34: #{tpu_custom_call.1} parent=11 // pred_check_branch
          %281 = sbr.rel (%p279) target = $region36
        $region35: #{tpu_custom_call.1} parent=11 // pred_region
          _
        $region36: #{tpu_custom_call.1} parent=11 // pred_fallthru
          _
      $region12: #{tpu_custom_call.1} parent=5 // pred_fallthru
        _
      %p282 = scmp.lt.s32.totalorder %s19, 2
      // Predicated region
      $region37: #{tpu_custom_call.1} parent=5 // pred_check
        %p283 = pneg %p282
      $region38: #{tpu_custom_call.1} parent=5 // pred_check_branch
        %285 = sbr.rel (%p283) target = $region40
      $region39: #{tpu_custom_call.1} parent=5 // pred_region
        // Predicated region
        $region41: #{tpu_custom_call.1} parent=39 // pred_check
          %p286 = pneg %p39
        $region42: #{tpu_custom_call.1} parent=39 // pred_check_branch
          %288 = sbr.rel (%p286) target = $region44
        $region43: #{tpu_custom_call.1} parent=39 // pred_region
          %s289 = smul.u32 2, %s19
          %p290 = scmp.lt.s32.totalorder %s289, 3
          %s291 = scalar_select %p290, %s289, 3
          %s292 = smul.addr %s291, 8
          %s293 = scalar_lea.vmem %s0, %s292
          %s294 = smul.u32 2, %s19
        $region44: #{tpu_custom_call.1} parent=39 // pred_fallthru
          _
        // Predicated region
        $region45: #{tpu_custom_call.1} parent=39 // pred_check
          %p295 = pneg %p65
        $region46: #{tpu_custom_call.1} parent=39 // pred_check_branch
          %297 = sbr.rel (%p295) target = $region48
        $region47: #{tpu_custom_call.1} parent=39 // pred_region
          %s298 = smul.u32 16, %s19
          %p299 = scmp.lt.s32.totalorder %s298, 31
          %s300 = scalar_select %p299, %s298, 31
          %s301 = smul.addr %s300, 2
          %s302 = smul.addr %s301, 4
          %s303 = scalar_lea.vmem %s1, %s302
          %s304 = smul.u32 16, %s19
        $region48: #{tpu_custom_call.1} parent=39 // pred_fallthru
          _
        // Predicated region
        $region49: #{tpu_custom_call.1} parent=39 // pred_check
          %p305 = pneg %p91
        $region50: #{tpu_custom_call.1} parent=39 // pred_check_branch
          %307 = sbr.rel (%p305) target = $region52
        $region51: #{tpu_custom_call.1} parent=39 // pred_region
          %s308 = smul.u32 16, %s19
          %p309 = scmp.lt.s32.totalorder %s308, 31
          %s310 = scalar_select %p309, %s308, 31
          %s311 = smul.addr %s310, 2
          %s312 = smul.addr %s311, 4
          %s313 = scalar_lea.vmem %s2, %s312
          %s314 = smul.u32 16, %s19
        $region52: #{tpu_custom_call.1} parent=39 // pred_fallthru
          _
      $region40: #{tpu_custom_call.1} parent=5 // pred_fallthru
        _
      %p315 = scmp.le.s32.totalorder 1, %s19
      %p316 = scmp.lt.s32.totalorder %s19, 3
      %p317 = pnand %p315, %p316
      %p318 = pneg %p317
      // Predicated region
      $region53: #{tpu_custom_call.1} parent=5 // pred_check
        _
      $region54: #{tpu_custom_call.1} parent=5 // pred_check_branch
        %320 = sbr.rel (%p317) target = $region56
      $region55: #{tpu_custom_call.1} parent=5 // pred_region
        %s321 = ssub.s32 %s19, 1
        %s322 = smul.u32 2, %s24
        %p323 = scmp.lt.s32.totalorder %s322, 3
        %s324 = scalar_select %p323, %s322, 3
        %s325 = smul.addr %s324, 8
        %s326 = scalar_lea.vmem %s0, %s325
        %p327 = pneg %p45
        %p328 = pneg %p42
        %s329 = smul.u32 16, %s24
        %p330 = scmp.lt.s32.totalorder %s329, 31
        %s331 = scalar_select %p330, %s329, 31
        %s332 = smul.addr %s331, 2
        %s333 = smul.addr %s332, 4
        %s334 = scalar_lea.vmem %s1, %s333
        %p335 = pneg %p71
        %p336 = pneg %p68
        %s337 = smul.u32 16, %s24
        %p338 = scmp.lt.s32.totalorder %s337, 31
        %s339 = scalar_select %p338, %s337, 31
        %s340 = smul.addr %s339, 2
        %s341 = smul.addr %s340, 4
        %s342 = scalar_lea.vmem %s2, %s341
        %p343 = pneg %p97
        %p344 = pneg %p94
        %p345 = pneg %p118
        %p346 = pneg %p115
        %p347 = pneg %p139
        %p348 = pneg %p136
        %p349 = pneg %p160
        %p350 = pneg %p157
        %p351 = pneg %p181
        %p352 = pneg %p178
        %p353 = pneg %p202
        %p354 = pneg %p199
        %p355 = pneg %p223
        %p356 = pneg %p220
        %p357 = pneg %p249
        %p358 = pneg %p246
        %s359 = sand.u32 %s236, 1
        %s360 = scalar_lea.sflag [#allocation4], %s359
        %s361 = sand.u32 %s236, 1
        %s362 = smul.addr %s361, 16
        %s363 = scalar_lea.vmem [#allocation3], %s362
        %s364 = smul.u32 2, %s24
        %p365 = scmp.lt.s32.totalorder %s364, 3
        %s366 = scalar_select %p365, %s364, 3
        %s367 = smul.addr %s366, 8
        %s368 = scalar_lea.vmem %s0, %s367
        %s369 = smul.u32 2, %s24
        %s370 = smul.u32 16, %s24
        %p371 = scmp.lt.s32.totalorder %s370, 31
        %s372 = scalar_select %p371, %s370, 31
        %s373 = smul.addr %s372, 2
        %s374 = smul.addr %s373, 4
        %s375 = scalar_lea.vmem %s1, %s374
        %s376 = smul.u32 16, %s24
        %s377 = smul.u32 16, %s24
        %p378 = scmp.lt.s32.totalorder %s377, 31
        %s379 = scalar_select %p378, %s377, 31
        %s380 = smul.addr %s379, 2
        %s381 = smul.addr %s380, 4
        %s382 = scalar_lea.vmem %s2, %s381
        %s383 = smul.u32 16, %s24
        %s384 = smul.u32 2, %s24
        %v386 = vld [vmem:[%s375] sm:$0xf]
        %v387 = vld [vmem:[%s375 + $0x4] sm:$0xf]
        %v388 = vld [vmem:[%s375 + $0x8] sm:$0xf]
        %v389 = vld [vmem:[%s375 + $0xc] sm:$0xf]
        %v390 = vld [vmem:[%s375 + $0x10] sm:$0xf]
        %v391 = vld [vmem:[%s375 + $0x14] sm:$0xf]
        %v392 = vld [vmem:[%s375 + $0x18] sm:$0xf]
        %v393 = vld [vmem:[%s375 + $0x1c] sm:$0xf]
        %v394 = vld [vmem:[%s375 + $0x20] sm:$0xf]
        %v395 = vld [vmem:[%s375 + $0x24] sm:$0xf]
        %v396 = vld [vmem:[%s375 + $0x28] sm:$0xf]
        %v397 = vld [vmem:[%s375 + $0x2c] sm:$0xf]
        %v398 = vld [vmem:[%s375 + $0x30] sm:$0xf]
        %v399 = vld [vmem:[%s375 + $0x34] sm:$0xf]
        %v400 = vld [vmem:[%s375 + $0x38] sm:$0xf]
        %v401 = vld [vmem:[%s375 + $0x3c] sm:$0xf]
        %v402 = vld [vmem:[%s375 + $0x40] sm:$0xf]
        %v403 = vld [vmem:[%s375 + $0x44] sm:$0xf]
        %v404 = vld [vmem:[%s375 + $0x48] sm:$0xf]
        %v405 = vld [vmem:[%s375 + $0x4c] sm:$0xf]
        %v406 = vld [vmem:[%s375 + $0x50] sm:$0xf]
        %v407 = vld [vmem:[%s375 + $0x54] sm:$0xf]
        %v408 = vld [vmem:[%s375 + $0x58] sm:$0xf]
        %v409 = vld [vmem:[%s375 + $0x5c] sm:$0xf]
        %v410 = vld [vmem:[%s375 + $0x60] sm:$0xf]
        %v411 = vld [vmem:[%s375 + $0x64] sm:$0xf]
        %v412 = vld [vmem:[%s375 + $0x68] sm:$0xf]
        %v413 = vld [vmem:[%s375 + $0x6c] sm:$0xf]
        %v414 = vld [vmem:[%s375 + $0x70] sm:$0xf]
        %v415 = vld [vmem:[%s375 + $0x74] sm:$0xf]
        %v416 = vld [vmem:[%s375 + $0x78] sm:$0xf]
        %v417 = vld [vmem:[%s375 + $0x7c] sm:$0xf]
        %v418 = vld [vmem:[%s382] sm:$0xf]
        %v419 = vld [vmem:[%s382 + $0x4] sm:$0xf]
        %v420 = vld [vmem:[%s382 + $0x8] sm:$0xf]
        %v421 = vld [vmem:[%s382 + $0xc] sm:$0xf]
        %v422 = vld [vmem:[%s382 + $0x10] sm:$0xf]
        %v423 = vld [vmem:[%s382 + $0x14] sm:$0xf]
        %v424 = vld [vmem:[%s382 + $0x18] sm:$0xf]
        %v425 = vld [vmem:[%s382 + $0x1c] sm:$0xf]
        %v426 = vld [vmem:[%s382 + $0x20] sm:$0xf]
        %v427 = vld [vmem:[%s382 + $0x24] sm:$0xf]
        %v428 = vld [vmem:[%s382 + $0x28] sm:$0xf]
        %v429 = vld [vmem:[%s382 + $0x2c] sm:$0xf]
        %v430 = vld [vmem:[%s382 + $0x30] sm:$0xf]
        %v431 = vld [vmem:[%s382 + $0x34] sm:$0xf]
        %v432 = vld [vmem:[%s382 + $0x38] sm:$0xf]
        %v433 = vld [vmem:[%s382 + $0x3c] sm:$0xf]
        %v434 = vld [vmem:[%s382 + $0x40] sm:$0xf]
        %v435 = vld [vmem:[%s382 + $0x44] sm:$0xf]
        %v436 = vld [vmem:[%s382 + $0x48] sm:$0xf]
        %v437 = vld [vmem:[%s382 + $0x4c] sm:$0xf]
        %v438 = vld [vmem:[%s382 + $0x50] sm:$0xf]
        %v439 = vld [vmem:[%s382 + $0x54] sm:$0xf]
        %v440 = vld [vmem:[%s382 + $0x58] sm:$0xf]
        %v441 = vld [vmem:[%s382 + $0x5c] sm:$0xf]
        %v442 = vld [vmem:[%s382 + $0x60] sm:$0xf]
        %v443 = vld [vmem:[%s382 + $0x64] sm:$0xf]
        %v444 = vld [vmem:[%s382 + $0x68] sm:$0xf]
        %v445 = vld [vmem:[%s382 + $0x6c] sm:$0xf]
        %v446 = vld [vmem:[%s382 + $0x70] sm:$0xf]
        %v447 = vld [vmem:[%s382 + $0x74] sm:$0xf]
        %v448 = vld [vmem:[%s382 + $0x78] sm:$0xf]
        %v449 = vld [vmem:[%s382 + $0x7c] sm:$0xf]
        %v450 = vld [vmem:[%s3] sm:$0xf]
        %v451 = vld [vmem:[%s3 + $0x4] sm:$0xf]
        %v452 = vld [vmem:[%s3 + $0x8] sm:$0xf]
        %v453 = vld [vmem:[%s3 + $0xc] sm:$0xf]
        %v486 = vunpack.c.l.b16 %v386
        %v487 = vunpack.c.l.b16 %v387
        %v488 = vunpack.c.l.b16 %v388
        %v489 = vunpack.c.l.b16 %v389
        %v490 = vunpack.c.l.b16 %v390
        %v491 = vunpack.c.l.b16 %v391
        %v492 = vunpack.c.l.b16 %v392
        %v493 = vunpack.c.l.b16 %v393
        %v494 = vunpack.c.l.b16 %v394
        %v495 = vunpack.c.l.b16 %v395
        %v496 = vunpack.c.l.b16 %v396
        %v497 = vunpack.c.l.b16 %v397
        %v498 = vunpack.c.l.b16 %v398
        %v499 = vunpack.c.l.b16 %v399
        %v500 = vunpack.c.l.b16 %v400
        %v501 = vunpack.c.l.b16 %v401
        %v502 = vunpack.c.l.b16 %v402
        %v503 = vunpack.c.l.b16 %v403
        %v504 = vunpack.c.l.b16 %v404
        %v505 = vunpack.c.l.b16 %v405
        %v506 = vunpack.c.l.b16 %v406
        %v507 = vunpack.c.l.b16 %v407
        %v508 = vunpack.c.l.b16 %v408
        %v509 = vunpack.c.l.b16 %v409
        %v510 = vunpack.c.l.b16 %v410
        %v511 = vunpack.c.l.b16 %v411
        %v512 = vunpack.c.l.b16 %v412
        %v513 = vunpack.c.l.b16 %v413
        %v514 = vunpack.c.l.b16 %v414
        %v515 = vunpack.c.l.b16 %v415
        %v516 = vunpack.c.l.b16 %v416
        %v517 = vunpack.c.l.b16 %v417
        %v518 = vpack.c.b16 %v487, %v486
        %v519 = vpack.c.b16 %v489, %v488
        %v520 = vpack.c.b16 %v491, %v490
        %v521 = vpack.c.b16 %v493, %v492
        %v522 = vpack.c.b16 %v495, %v494
        %v523 = vpack.c.b16 %v497, %v496
        %v524 = vpack.c.b16 %v499, %v498
        %v525 = vpack.c.b16 %v501, %v500
        %v526 = vpack.c.b16 %v503, %v502
        %v527 = vpack.c.b16 %v505, %v504
        %v528 = vpack.c.b16 %v507, %v506
        %v529 = vpack.c.b16 %v509, %v508
        %v530 = vpack.c.b16 %v511, %v510
        %v531 = vpack.c.b16 %v513, %v512
        %v532 = vpack.c.b16 %v515, %v514
        %v533 = vpack.c.b16 %v517, %v516
        %v538 = vunpack.c.l.b16 %v450
        %v539 = vunpack.c.l.b16 %v451
        %v540 = vunpack.c.l.b16 %v452
        %v541 = vunpack.c.l.b16 %v453
        %v542 = vpack.c.b16 %v539, %v538
        %v543 = vpack.c.b16 %v541, %v540
        %vm546 = vcmask 261120
        %v548 = vsel %vm546, %v518, 0
        %v551 = vsel %vm546, %v519, 0
        %v554 = vsel %vm546, %v520, 0
        %v557 = vsel %vm546, %v521, 0
        %v560 = vsel %vm546, %v522, 0
        %v563 = vsel %vm546, %v523, 0
        %v566 = vsel %vm546, %v524, 0
        %v569 = vsel %vm546, %v525, 0
        %v572 = vsel %vm546, %v526, 0
        %v575 = vsel %vm546, %v527, 0
        %v578 = vsel %vm546, %v528, 0
        %v581 = vsel %vm546, %v529, 0
        %v584 = vsel %vm546, %v530, 0
        %v587 = vsel %vm546, %v531, 0
        %v590 = vsel %vm546, %v532, 0
        %v593 = vsel %vm546, %v533, 0
        %595 = vmatprep.subr.bf16.mxu0 0
        %596 = vmatpush1.bf16.msra.mxu0 %v542
        %597 = vmatprep.subr.bf16.mxu0 0
        %598 = vmatpush1.bf16.msra.mxu0 %v543
        %599 = vmatprep.subr.bf16.mxu0 0
        %600 = vmatpush1.bf16.msra.mxu0 0
        %601 = vmatprep.subr.bf16.mxu0 0
        %602 = vmatpush1.bf16.msra.mxu0 0
        %603 = vmatprep.subr.bf16.mxu0 0
        %604 = vmatpush1.bf16.msra.mxu0 0
        %605 = vmatprep.subr.bf16.mxu0 0
        %606 = vmatpush1.bf16.msra.mxu0 0
        %607 = vmatprep.subr.bf16.mxu0 0
        %608 = vmatpush1.bf16.msra.mxu0 0
        %609 = vmatprep.subr.bf16.mxu0 0
        %610 = vmatpush1.bf16.msra.mxu0 0
        %611 = vmatprep.subr.bf16.mxu0 0
        %612 = vmatpush1.bf16.msra.mxu0 0
        %613 = vmatprep.subr.bf16.mxu0 0
        %614 = vmatpush1.bf16.msra.mxu0 0
        %615 = vmatprep.subr.bf16.mxu0 0
        %616 = vmatpush1.bf16.msra.mxu0 0
        %617 = vmatprep.subr.bf16.mxu0 0
        %618 = vmatpush1.bf16.msra.mxu0 0
        %619 = vmatprep.subr.bf16.mxu0 0
        %620 = vmatpush1.bf16.msra.mxu0 0
        %621 = vmatprep.subr.bf16.mxu0 0
        %622 = vmatpush1.bf16.msra.mxu0 0
        %623 = vmatprep.subr.bf16.mxu0 0
        %624 = vmatpush1.bf16.msra.mxu0 0
        %625 = vmatprep.subr.bf16.mxu0 0
        %626 = vmatpush1.bf16.msra.mxu0 0
        %627 = vmatprep.mubr.bf16.mxu0 0
        %628 = vmatmul.mubr.bf16.gmra.mrb[0].mxu0 %v548
        %v629 = vpop.f32.mrb[0].mxu0
        %v630 = vadd.f32 0.0, %v629
        %v631 = vpop.f32.mrb[0].mxu0
        %v632 = vpop.f32.mrb[0].mxu0
        %v633 = vadd.f32 0.0, %v632
        %v634 = vpop.f32.mrb[0].mxu0
        %635 = vmatprep.mubr.bf16.mxu0 0
        %636 = vmatmul.mubr.bf16.gmra.mrb[0].mxu0 %v551
        %v637 = vpop.f32.mrb[0].mxu0
        %v638 = vadd.f32 0.0, %v637
        %v639 = vpop.f32.mrb[0].mxu0
        %v640 = vpop.f32.mrb[0].mxu0
        %v641 = vadd.f32 0.0, %v640
        %v642 = vpop.f32.mrb[0].mxu0
        %643 = vmatprep.mubr.bf16.mxu0 0
        %644 = vmatmul.mubr.bf16.gmra.mrb[0].mxu0 %v554
        %v645 = vpop.f32.mrb[0].mxu0
        %v646 = vadd.f32 0.0, %v645
        %v647 = vpop.f32.mrb[0].mxu0
        %v648 = vpop.f32.mrb[0].mxu0
        %v649 = vadd.f32 0.0, %v648
        %v650 = vpop.f32.mrb[0].mxu0
        %651 = vmatprep.mubr.bf16.mxu0 0
        %652 = vmatmul.mubr.bf16.gmra.mrb[0].mxu0 %v557
        %v653 = vpop.f32.mrb[0].mxu0
        %v654 = vadd.f32 0.0, %v653
        %v655 = vpop.f32.mrb[0].mxu0
        %v656 = vpop.f32.mrb[0].mxu0
        %v657 = vadd.f32 0.0, %v656
        %v658 = vpop.f32.mrb[0].mxu0
        %659 = vmatprep.mubr.bf16.mxu0 0
        %660 = vmatmul.mubr.bf16.gmra.mrb[0].mxu0 %v560
        %v661 = vpop.f32.mrb[0].mxu0
        %v662 = vadd.f32 0.0, %v661
        %v663 = vpop.f32.mrb[0].mxu0
        %v664 = vpop.f32.mrb[0].mxu0
        %v665 = vadd.f32 0.0, %v664
        %v666 = vpop.f32.mrb[0].mxu0
        %667 = vmatprep.mubr.bf16.mxu0 0
        %668 = vmatmul.mubr.bf16.gmra.mrb[0].mxu0 %v563
        %v669 = vpop.f32.mrb[0].mxu0
        %v670 = vadd.f32 0.0, %v669
        %v671 = vpop.f32.mrb[0].mxu0
        %v672 = vpop.f32.mrb[0].mxu0
        %v673 = vadd.f32 0.0, %v672
        %v674 = vpop.f32.mrb[0].mxu0
        %675 = vmatprep.mubr.bf16.mxu0 0
        %676 = vmatmul.mubr.bf16.gmra.mrb[0].mxu0 %v566
        %v677 = vpop.f32.mrb[0].mxu0
        %v678 = vadd.f32 0.0, %v677
        %v679 = vpop.f32.mrb[0].mxu0
        %v680 = vpop.f32.mrb[0].mxu0
        %v681 = vadd.f32 0.0, %v680
        %v682 = vpop.f32.mrb[0].mxu0
        %683 = vmatprep.mubr.bf16.mxu0 0
        %684 = vmatmul.mubr.bf16.gmra.mrb[0].mxu0 %v569
        %v685 = vpop.f32.mrb[0].mxu0
        %v686 = vadd.f32 0.0, %v685
        %v687 = vpop.f32.mrb[0].mxu0
        %v688 = vpop.f32.mrb[0].mxu0
        %v689 = vadd.f32 0.0, %v688
        %v690 = vpop.f32.mrb[0].mxu0
        %691 = vmatprep.mubr.bf16.mxu0 0
        %692 = vmatmul.mubr.bf16.gmra.mrb[0].mxu0 %v572
        %v693 = vpop.f32.mrb[0].mxu0
        %v694 = vadd.f32 0.0, %v693
        %v695 = vpop.f32.mrb[0].mxu0
        %v696 = vpop.f32.mrb[0].mxu0
        %v697 = vadd.f32 0.0, %v696
        %v698 = vpop.f32.mrb[0].mxu0
        %699 = vmatprep.mubr.bf16.mxu0 0
        %700 = vmatmul.mubr.bf16.gmra.mrb[0].mxu0 %v575
        %v701 = vpop.f32.mrb[0].mxu0
        %v702 = vadd.f32 0.0, %v701
        %v703 = vpop.f32.mrb[0].mxu0
        %v704 = vpop.f32.mrb[0].mxu0
        %v705 = vadd.f32 0.0, %v704
        %v706 = vpop.f32.mrb[0].mxu0
        %707 = vmatprep.mubr.bf16.mxu0 0
        %708 = vmatmul.mubr.bf16.gmra.mrb[0].mxu0 %v578
        %v709 = vpop.f32.mrb[0].mxu0
        %v710 = vadd.f32 0.0, %v709
        %v711 = vpop.f32.mrb[0].mxu0
        %v712 = vpop.f32.mrb[0].mxu0
        %v713 = vadd.f32 0.0, %v712
        %v714 = vpop.f32.mrb[0].mxu0
        %715 = vmatprep.mubr.bf16.mxu0 0
        %716 = vmatmul.mubr.bf16.gmra.mrb[0].mxu0 %v581
        %v717 = vpop.f32.mrb[0].mxu0
        %v718 = vadd.f32 0.0, %v717
        %v719 = vpop.f32.mrb[0].mxu0
        %v720 = vpop.f32.mrb[0].mxu0
        %v721 = vadd.f32 0.0, %v720
        %v722 = vpop.f32.mrb[0].mxu0
        %723 = vmatprep.mubr.bf16.mxu0 0
        %724 = vmatmul.mubr.bf16.gmra.mrb[0].mxu0 %v584
        %v725 = vpop.f32.mrb[0].mxu0
        %v726 = vadd.f32 0.0, %v725
        %v727 = vpop.f32.mrb[0].mxu0
        %v728 = vpop.f32.mrb[0].mxu0
        %v729 = vadd.f32 0.0, %v728
        %v730 = vpop.f32.mrb[0].mxu0
        %731 = vmatprep.mubr.bf16.mxu0 0
        %732 = vmatmul.mubr.bf16.gmra.mrb[0].mxu0 %v587
        %v733 = vpop.f32.mrb[0].mxu0
        %v734 = vadd.f32 0.0, %v733
        %v735 = vpop.f32.mrb[0].mxu0
        %v736 = vpop.f32.mrb[0].mxu0
        %v737 = vadd.f32 0.0, %v736
        %v738 = vpop.f32.mrb[0].mxu0
        %739 = vmatprep.mubr.bf16.mxu0 0
        %740 = vmatmul.mubr.bf16.gmra.mrb[0].mxu0 %v590
        %v741 = vpop.f32.mrb[0].mxu0
        %v742 = vadd.f32 0.0, %v741
        %v743 = vpop.f32.mrb[0].mxu0
        %v744 = vpop.f32.mrb[0].mxu0
        %v745 = vadd.f32 0.0, %v744
        %v746 = vpop.f32.mrb[0].mxu0
        %747 = vmatprep.mubr.bf16.mxu0 0
        %748 = vmatmul.mubr.bf16.gmra.mrb[0].mxu0 %v593
        %v749 = vpop.f32.mrb[0].mxu0
        %v750 = vadd.f32 0.0, %v749
        %v751 = vpop.f32.mrb[0].mxu0
        %v752 = vpop.f32.mrb[0].mxu0
        %v753 = vadd.f32 0.0, %v752
        %v754 = vpop.f32.mrb[0].mxu0
        %755 = vdwg.mxu0
        %v756 = vand.u32 2147483647, %v630
        %v757 = vand.u32 2147483647, %v633
        %v758 = vand.u32 2147483647, %v638
        %v759 = vand.u32 2147483647, %v641
        %v760 = vand.u32 2147483647, %v646
        %v761 = vand.u32 2147483647, %v649
        %v762 = vand.u32 2147483647, %v654
        %v763 = vand.u32 2147483647, %v657
        %v764 = vand.u32 2147483647, %v662
        %v765 = vand.u32 2147483647, %v665
        %v766 = vand.u32 2147483647, %v670
        %v767 = vand.u32 2147483647, %v673
        %v768 = vand.u32 2147483647, %v678
        %v769 = vand.u32 2147483647, %v681
        %v770 = vand.u32 2147483647, %v686
        %v771 = vand.u32 2147483647, %v689
        %v772 = vand.u32 2147483647, %v694
        %v773 = vand.u32 2147483647, %v697
        %v774 = vand.u32 2147483647, %v702
        %v775 = vand.u32 2147483647, %v705
        %v776 = vand.u32 2147483647, %v710
        %v777 = vand.u32 2147483647, %v713
        %v778 = vand.u32 2147483647, %v718
        %v779 = vand.u32 2147483647, %v721
        %v780 = vand.u32 2147483647, %v726
        %v781 = vand.u32 2147483647, %v729
        %v782 = vand.u32 2147483647, %v734
        %v783 = vand.u32 2147483647, %v737
        %v784 = vand.u32 2147483647, %v742
        %v785 = vand.u32 2147483647, %v745
        %v786 = vand.u32 2147483647, %v750
        %v787 = vand.u32 2147483647, %v753
        %vm788 = vcmask 64512
        %v789 = vsel %vm788, %v756, -inf
        %790 = vmax.xlane.f32.xlu0 %v789
        %v791 = vpop.xlane.xlu0 %790
        %v792 = vsel %vm788, %v757, -inf
        %793 = vmax.xlane.f32.xlu0 %v792
        %v794 = vpop.xlane.xlu0 %793
        %v795 = vsel %vm788, %v758, -inf
        %796 = vmax.xlane.f32.xlu0 %v795
        %v797 = vpop.xlane.xlu0 %796
        %v798 = vsel %vm788, %v759, -inf
        %799 = vmax.xlane.f32.xlu0 %v798
        %v800 = vpop.xlane.xlu0 %799
        %v801 = vsel %vm788, %v760, -inf
        %802 = vmax.xlane.f32.xlu0 %v801
        %v803 = vpop.xlane.xlu0 %802
        %v804 = vsel %vm788, %v761, -inf
        %805 = vmax.xlane.f32.xlu0 %v804
        %v806 = vpop.xlane.xlu0 %805
        %v807 = vsel %vm788, %v762, -inf
        %808 = vmax.xlane.f32.xlu0 %v807
        %v809 = vpop.xlane.xlu0 %808
        %v810 = vsel %vm788, %v763, -inf
        %811 = vmax.xlane.f32.xlu0 %v810
        %v812 = vpop.xlane.xlu0 %811
        %v813 = vsel %vm788, %v764, -inf
        %814 = vmax.xlane.f32.xlu0 %v813
        %v815 = vpop.xlane.xlu0 %814
        %v816 = vsel %vm788, %v765, -inf
        %817 = vmax.xlane.f32.xlu0 %v816
        %v818 = vpop.xlane.xlu0 %817
        %v819 = vsel %vm788, %v766, -inf
        %820 = vmax.xlane.f32.xlu0 %v819
        %v821 = vpop.xlane.xlu0 %820
        %v822 = vsel %vm788, %v767, -inf
        %823 = vmax.xlane.f32.xlu0 %v822
        %v824 = vpop.xlane.xlu0 %823
        %v825 = vsel %vm788, %v768, -inf
        %826 = vmax.xlane.f32.xlu0 %v825
        %v827 = vpop.xlane.xlu0 %826
        %v828 = vsel %vm788, %v769, -inf
        %829 = vmax.xlane.f32.xlu0 %v828
        %v830 = vpop.xlane.xlu0 %829
        %v831 = vsel %vm788, %v770, -inf
        %832 = vmax.xlane.f32.xlu0 %v831
        %v833 = vpop.xlane.xlu0 %832
        %v834 = vsel %vm788, %v771, -inf
        %835 = vmax.xlane.f32.xlu0 %v834
        %v836 = vpop.xlane.xlu0 %835
        %v837 = vsel %vm788, %v772, -inf
        %838 = vmax.xlane.f32.xlu0 %v837
        %v839 = vpop.xlane.xlu0 %838
        %v840 = vsel %vm788, %v773, -inf
        %841 = vmax.xlane.f32.xlu0 %v840
        %v842 = vpop.xlane.xlu0 %841
        %v843 = vsel %vm788, %v774, -inf
        %844 = vmax.xlane.f32.xlu0 %v843
        %v845 = vpop.xlane.xlu0 %844
        %v846 = vsel %vm788, %v775, -inf
        %847 = vmax.xlane.f32.xlu0 %v846
        %v848 = vpop.xlane.xlu0 %847
        %v849 = vsel %vm788, %v776, -inf
        %850 = vmax.xlane.f32.xlu0 %v849
        %v851 = vpop.xlane.xlu0 %850
        %v852 = vsel %vm788, %v777, -inf
        %853 = vmax.xlane.f32.xlu0 %v852
        %v854 = vpop.xlane.xlu0 %853
        %v855 = vsel %vm788, %v778, -inf
        %856 = vmax.xlane.f32.xlu0 %v855
        %v857 = vpop.xlane.xlu0 %856
        %v858 = vsel %vm788, %v779, -inf
        %859 = vmax.xlane.f32.xlu0 %v858
        %v860 = vpop.xlane.xlu0 %859
        %v861 = vsel %vm788, %v780, -inf
        %862 = vmax.xlane.f32.xlu0 %v861
        %v863 = vpop.xlane.xlu0 %862
        %v864 = vsel %vm788, %v781, -inf
        %865 = vmax.xlane.f32.xlu0 %v864
        %v866 = vpop.xlane.xlu0 %865
        %v867 = vsel %vm788, %v782, -inf
        %868 = vmax.xlane.f32.xlu0 %v867
        %v869 = vpop.xlane.xlu0 %868
        %v870 = vsel %vm788, %v783, -inf
        %871 = vmax.xlane.f32.xlu0 %v870
        %v872 = vpop.xlane.xlu0 %871
        %v873 = vsel %vm788, %v784, -inf
        %874 = vmax.xlane.f32.xlu0 %v873
        %v875 = vpop.xlane.xlu0 %874
        %v876 = vsel %vm788, %v785, -inf
        %877 = vmax.xlane.f32.xlu0 %v876
        %v878 = vpop.xlane.xlu0 %877
        %v879 = vsel %vm788, %v786, -inf
        %880 = vmax.xlane.f32.xlu0 %v879
        %v881 = vpop.xlane.xlu0 %880
        %v882 = vsel %vm788, %v787, -inf
        %883 = vmax.xlane.f32.xlu0 %v882
        %v884 = vpop.xlane.xlu0 %883
        %v885 = vld [vmem:[%s4] sm:$0xf]
        %v886 = vld [vmem:[%s4 + $0x4] sm:$0xf]
        %v887 = vld [vmem:[%s4 + $0x8] sm:$0x1]
        %v888 = vld [vmem:[%s5] sm:$0x1]
        %v890 = vlaneseq
        %v891 = vshrl.u32 %v890, 7
        %v892 = vsub.s32 0, %v891
        %v893 = vrot.slane %v888, %v892
        %v895 = vmul.f32 %v791, %v893
        %v896 = vmul.f32 %v794, %v893
        %v897 = vmul.f32 %v797, %v893
        %v898 = vmul.f32 %v800, %v893
        %v899 = vmul.f32 %v803, %v893
        %v900 = vmul.f32 %v806, %v893
        %v901 = vmul.f32 %v809, %v893
        %v902 = vmul.f32 %v812, %v893
        %v903 = vmul.f32 %v815, %v893
        %v904 = vmul.f32 %v818, %v893
        %v905 = vmul.f32 %v821, %v893
        %v906 = vmul.f32 %v824, %v893
        %v907 = vmul.f32 %v827, %v893
        %v908 = vmul.f32 %v830, %v893
        %v909 = vmul.f32 %v833, %v893
        %v910 = vmul.f32 %v836, %v893
        %v911 = vmul.f32 %v839, %v893
        %v912 = vmul.f32 %v842, %v893
        %v913 = vmul.f32 %v845, %v893
        %v914 = vmul.f32 %v848, %v893
        %v915 = vmul.f32 %v851, %v893
        %v916 = vmul.f32 %v854, %v893
        %v917 = vmul.f32 %v857, %v893
        %v918 = vmul.f32 %v860, %v893
        %v919 = vmul.f32 %v863, %v893
        %v920 = vmul.f32 %v866, %v893
        %v921 = vmul.f32 %v869, %v893
        %v922 = vmul.f32 %v872, %v893
        %v923 = vmul.f32 %v875, %v893
        %v924 = vmul.f32 %v878, %v893
        %v925 = vmul.f32 %v881, %v893
        %v926 = vmul.f32 %v884, %v893
        %v959 = vunpack.c.l.b16 %v418
        %v960 = vunpack.c.l.b16 %v419
        %v961 = vunpack.c.l.b16 %v420
        %v962 = vunpack.c.l.b16 %v421
        %v963 = vunpack.c.l.b16 %v422
        %v964 = vunpack.c.l.b16 %v423
        %v965 = vunpack.c.l.b16 %v424
        %v966 = vunpack.c.l.b16 %v425
        %v967 = vunpack.c.l.b16 %v426
        %v968 = vunpack.c.l.b16 %v427
        %v969 = vunpack.c.l.b16 %v428
        %v970 = vunpack.c.l.b16 %v429
        %v971 = vunpack.c.l.b16 %v430
        %v972 = vunpack.c.l.b16 %v431
        %v973 = vunpack.c.l.b16 %v432
        %v974 = vunpack.c.l.b16 %v433
        %v975 = vunpack.c.l.b16 %v434
        %v976 = vunpack.c.l.b16 %v435
        %v977 = vunpack.c.l.b16 %v436
        %v978 = vunpack.c.l.b16 %v437
        %v979 = vunpack.c.l.b16 %v438
        %v980 = vunpack.c.l.b16 %v439
        %v981 = vunpack.c.l.b16 %v440
        %v982 = vunpack.c.l.b16 %v441
        %v983 = vunpack.c.l.b16 %v442
        %v984 = vunpack.c.l.b16 %v443
        %v985 = vunpack.c.l.b16 %v444
        %v986 = vunpack.c.l.b16 %v445
        %v987 = vunpack.c.l.b16 %v446
        %v988 = vunpack.c.l.b16 %v447
        %v989 = vunpack.c.l.b16 %v448
        %v990 = vunpack.c.l.b16 %v449
        %v991 = vpack.c.b16 %v960, %v959
        %v992 = vpack.c.b16 %v962, %v961
        %v993 = vpack.c.b16 %v964, %v963
        %v994 = vpack.c.b16 %v966, %v965
        %v995 = vpack.c.b16 %v968, %v967
        %v996 = vpack.c.b16 %v970, %v969
        %v997 = vpack.c.b16 %v972, %v971
        %v998 = vpack.c.b16 %v974, %v973
        %v999 = vpack.c.b16 %v976, %v975
        %v1000 = vpack.c.b16 %v978, %v977
        %v1001 = vpack.c.b16 %v980, %v979
        %v1002 = vpack.c.b16 %v982, %v981
        %v1003 = vpack.c.b16 %v984, %v983
        %v1004 = vpack.c.b16 %v986, %v985
        %v1005 = vpack.c.b16 %v988, %v987
        %v1006 = vpack.c.b16 %v990, %v989
        %v1010 = vunpack.c.l.b16 %v885
        %v1011 = vunpack.c.l.b16 %v886
        %v1012 = vunpack.c.l.b16 %v887
        %v1013 = vpack.c.b16 %v1011, %v1010
        %v1014 = vpack.c.b16 %v1012, %v1012
        %vm1016 = vcmask 146432
        %v1018 = vsel %vm1016, %v991, 0
        %v1021 = vsel %vm1016, %v992, 0
        %v1024 = vsel %vm1016, %v993, 0
        %v1027 = vsel %vm1016, %v994, 0
        %v1030 = vsel %vm1016, %v995, 0
        %v1033 = vsel %vm1016, %v996, 0
        %v1036 = vsel %vm1016, %v997, 0
        %v1039 = vsel %vm1016, %v998, 0
        %v1042 = vsel %vm1016, %v999, 0
        %v1045 = vsel %vm1016, %v1000, 0
        %v1048 = vsel %vm1016, %v1001, 0
        %v1051 = vsel %vm1016, %v1002, 0
        %v1054 = vsel %vm1016, %v1003, 0
        %v1057 = vsel %vm1016, %v1004, 0
        %v1060 = vsel %vm1016, %v1005, 0
        %v1063 = vsel %vm1016, %v1006, 0
        %vm1065 = vcmask 1040384
        %v1067 = vsel %vm1065, %v1014, 0
        %1069 = vmatprep.subr.bf16.mxu0 0
        %1070 = vmatpush1.bf16.msra.mxu0 %v1013
        %1071 = vmatprep.subr.bf16.mxu0 0
        %1072 = vmatpush1.bf16.msra.mxu0 %v1067
        %1073 = vmatprep.subr.bf16.mxu0 0
        %1074 = vmatpush1.bf16.msra.mxu0 0
        %1075 = vmatprep.subr.bf16.mxu0 0
        %1076 = vmatpush1.bf16.msra.mxu0 0
        %1077 = vmatprep.subr.bf16.mxu0 0
        %1078 = vmatpush1.bf16.msra.mxu0 0
        %1079 = vmatprep.subr.bf16.mxu0 0
        %1080 = vmatpush1.bf16.msra.mxu0 0
        %1081 = vmatprep.subr.bf16.mxu0 0
        %1082 = vmatpush1.bf16.msra.mxu0 0
        %1083 = vmatprep.subr.bf16.mxu0 0
        %1084 = vmatpush1.bf16.msra.mxu0 0
        %1085 = vmatprep.subr.bf16.mxu0 0
        %1086 = vmatpush1.bf16.msra.mxu0 0
        %1087 = vmatprep.subr.bf16.mxu0 0
        %1088 = vmatpush1.bf16.msra.mxu0 0
        %1089 = vmatprep.subr.bf16.mxu0 0
        %1090 = vmatpush1.bf16.msra.mxu0 0
        %1091 = vmatprep.subr.bf16.mxu0 0
        %1092 = vmatpush1.bf16.msra.mxu0 0
        %1093 = vmatprep.subr.bf16.mxu0 0
        %1094 = vmatpush1.bf16.msra.mxu0 0
        %1095 = vmatprep.subr.bf16.mxu0 0
        %1096 = vmatpush1.bf16.msra.mxu0 0
        %1097 = vmatprep.subr.bf16.mxu0 0
        %1098 = vmatpush1.bf16.msra.mxu0 0
        %1099 = vmatprep.subr.bf16.mxu0 0
        %1100 = vmatpush1.bf16.msra.mxu0 0
        %1101 = vmatprep.mubr.bf16.mxu0 0
        %1102 = vmatmul.mubr.bf16.gmra.mrb[0].mxu0 %v1018
        %v1103 = vpop.f32.mrb[0].mxu0
        %v1104 = vadd.f32 %v895, %v1103
        %v1105 = vpop.f32.mrb[0].mxu0
        %v1106 = vpop.f32.mrb[0].mxu0
        %v1107 = vadd.f32 %v896, %v1106
        %v1108 = vpop.f32.mrb[0].mxu0
        %1109 = vmatprep.mubr.bf16.mxu0 0
        %1110 = vmatmul.mubr.bf16.gmra.mrb[0].mxu0 %v1021
        %v1111 = vpop.f32.mrb[0].mxu0
        %v1112 = vadd.f32 %v897, %v1111
        %v1113 = vpop.f32.mrb[0].mxu0
        %v1114 = vpop.f32.mrb[0].mxu0
        %v1115 = vadd.f32 %v898, %v1114
        %v1116 = vpop.f32.mrb[0].mxu0
        %1117 = vmatprep.mubr.bf16.mxu0 0
        %1118 = vmatmul.mubr.bf16.gmra.mrb[0].mxu0 %v1024
        %v1119 = vpop.f32.mrb[0].mxu0
        %v1120 = vadd.f32 %v899, %v1119
        %v1121 = vpop.f32.mrb[0].mxu0
        %v1122 = vpop.f32.mrb[0].mxu0
        %v1123 = vadd.f32 %v900, %v1122
        %v1124 = vpop.f32.mrb[0].mxu0
        %1125 = vmatprep.mubr.bf16.mxu0 0
        %1126 = vmatmul.mubr.bf16.gmra.mrb[0].mxu0 %v1027
        %v1127 = vpop.f32.mrb[0].mxu0
        %v1128 = vadd.f32 %v901, %v1127
        %v1129 = vpop.f32.mrb[0].mxu0
        %v1130 = vpop.f32.mrb[0].mxu0
        %v1131 = vadd.f32 %v902, %v1130
        %v1132 = vpop.f32.mrb[0].mxu0
        %1133 = vmatprep.mubr.bf16.mxu0 0
        %1134 = vmatmul.mubr.bf16.gmra.mrb[0].mxu0 %v1030
        %v1135 = vpop.f32.mrb[0].mxu0
        %v1136 = vadd.f32 %v903, %v1135
        %v1137 = vpop.f32.mrb[0].mxu0
        %v1138 = vpop.f32.mrb[0].mxu0
        %v1139 = vadd.f32 %v904, %v1138
        %v1140 = vpop.f32.mrb[0].mxu0
        %1141 = vmatprep.mubr.bf16.mxu0 0
        %1142 = vmatmul.mubr.bf16.gmra.mrb[0].mxu0 %v1033
        %v1143 = vpop.f32.mrb[0].mxu0
        %v1144 = vadd.f32 %v905, %v1143
        %v1145 = vpop.f32.mrb[0].mxu0
        %v1146 = vpop.f32.mrb[0].mxu0
        %v1147 = vadd.f32 %v906, %v1146
        %v1148 = vpop.f32.mrb[0].mxu0
        %1149 = vmatprep.mubr.bf16.mxu0 0
        %1150 = vmatmul.mubr.bf16.gmra.mrb[0].mxu0 %v1036
        %v1151 = vpop.f32.mrb[0].mxu0
        %v1152 = vadd.f32 %v907, %v1151
        %v1153 = vpop.f32.mrb[0].mxu0
        %v1154 = vpop.f32.mrb[0].mxu0
        %v1155 = vadd.f32 %v908, %v1154
        %v1156 = vpop.f32.mrb[0].mxu0
        %1157 = vmatprep.mubr.bf16.mxu0 0
        %1158 = vmatmul.mubr.bf16.gmra.mrb[0].mxu0 %v1039
        %v1159 = vpop.f32.mrb[0].mxu0
        %v1160 = vadd.f32 %v909, %v1159
        %v1161 = vpop.f32.mrb[0].mxu0
        %v1162 = vpop.f32.mrb[0].mxu0
        %v1163 = vadd.f32 %v910, %v1162
        %v1164 = vpop.f32.mrb[0].mxu0
        %1165 = vmatprep.mubr.bf16.mxu0 0
        %1166 = vmatmul.mubr.bf16.gmra.mrb[0].mxu0 %v1042
        %v1167 = vpop.f32.mrb[0].mxu0
        %v1168 = vadd.f32 %v911, %v1167
        %v1169 = vpop.f32.mrb[0].mxu0
        %v1170 = vpop.f32.mrb[0].mxu0
        %v1171 = vadd.f32 %v912, %v1170
        %v1172 = vpop.f32.mrb[0].mxu0
        %1173 = vmatprep.mubr.bf16.mxu0 0
        %1174 = vmatmul.mubr.bf16.gmra.mrb[0].mxu0 %v1045
        %v1175 = vpop.f32.mrb[0].mxu0
        %v1176 = vadd.f32 %v913, %v1175
        %v1177 = vpop.f32.mrb[0].mxu0
        %v1178 = vpop.f32.mrb[0].mxu0
        %v1179 = vadd.f32 %v914, %v1178
        %v1180 = vpop.f32.mrb[0].mxu0
        %1181 = vmatprep.mubr.bf16.mxu0 0
        %1182 = vmatmul.mubr.bf16.gmra.mrb[0].mxu0 %v1048
        %v1183 = vpop.f32.mrb[0].mxu0
        %v1184 = vadd.f32 %v915, %v1183
        %v1185 = vpop.f32.mrb[0].mxu0
        %v1186 = vpop.f32.mrb[0].mxu0
        %v1187 = vadd.f32 %v916, %v1186
        %v1188 = vpop.f32.mrb[0].mxu0
        %1189 = vmatprep.mubr.bf16.mxu0 0
        %1190 = vmatmul.mubr.bf16.gmra.mrb[0].mxu0 %v1051
        %v1191 = vpop.f32.mrb[0].mxu0
        %v1192 = vadd.f32 %v917, %v1191
        %v1193 = vpop.f32.mrb[0].mxu0
        %v1194 = vpop.f32.mrb[0].mxu0
        %v1195 = vadd.f32 %v918, %v1194
        %v1196 = vpop.f32.mrb[0].mxu0
        %1197 = vmatprep.mubr.bf16.mxu0 0
        %1198 = vmatmul.mubr.bf16.gmra.mrb[0].mxu0 %v1054
        %v1199 = vpop.f32.mrb[0].mxu0
        %v1200 = vadd.f32 %v919, %v1199
        %v1201 = vpop.f32.mrb[0].mxu0
        %v1202 = vpop.f32.mrb[0].mxu0
        %v1203 = vadd.f32 %v920, %v1202
        %v1204 = vpop.f32.mrb[0].mxu0
        %1205 = vmatprep.mubr.bf16.mxu0 0
        %1206 = vmatmul.mubr.bf16.gmra.mrb[0].mxu0 %v1057
        %v1207 = vpop.f32.mrb[0].mxu0
        %v1208 = vadd.f32 %v921, %v1207
        %v1209 = vpop.f32.mrb[0].mxu0
        %v1210 = vpop.f32.mrb[0].mxu0
        %v1211 = vadd.f32 %v922, %v1210
        %v1212 = vpop.f32.mrb[0].mxu0
        %1213 = vmatprep.mubr.bf16.mxu0 0
        %1214 = vmatmul.mubr.bf16.gmra.mrb[0].mxu0 %v1060
        %v1215 = vpop.f32.mrb[0].mxu0
        %v1216 = vadd.f32 %v923, %v1215
        %v1217 = vpop.f32.mrb[0].mxu0
        %v1218 = vpop.f32.mrb[0].mxu0
        %v1219 = vadd.f32 %v924, %v1218
        %v1220 = vpop.f32.mrb[0].mxu0
        %1221 = vmatprep.mubr.bf16.mxu0 0
        %1222 = vmatmul.mubr.bf16.gmra.mrb[0].mxu0 %v1063
        %v1223 = vpop.f32.mrb[0].mxu0
        %v1224 = vadd.f32 %v925, %v1223
        %v1225 = vpop.f32.mrb[0].mxu0
        %v1226 = vpop.f32.mrb[0].mxu0
        %v1227 = vadd.f32 %v926, %v1226
        %v1228 = vpop.f32.mrb[0].mxu0
        %1229 = vdwg.mxu0
        %v1230 = vld [vmem:[%s6] sm:$0x1]
        %v1232 = vlaneseq
        %v1233 = vshrl.u32 %v1232, 7
        %v1234 = vsub.s32 0, %v1233
        %v1235 = vrot.slane %v1230, %v1234
        %v1237 = vadd.f32 %v1104, %v1235
        %v1238 = vadd.f32 %v1107, %v1235
        %v1239 = vadd.f32 %v1112, %v1235
        %v1240 = vadd.f32 %v1115, %v1235
        %v1241 = vadd.f32 %v1120, %v1235
        %v1242 = vadd.f32 %v1123, %v1235
        %v1243 = vadd.f32 %v1128, %v1235
        %v1244 = vadd.f32 %v1131, %v1235
        %v1245 = vadd.f32 %v1136, %v1235
        %v1246 = vadd.f32 %v1139, %v1235
        %v1247 = vadd.f32 %v1144, %v1235
        %v1248 = vadd.f32 %v1147, %v1235
        %v1249 = vadd.f32 %v1152, %v1235
        %v1250 = vadd.f32 %v1155, %v1235
        %v1251 = vadd.f32 %v1160, %v1235
        %v1252 = vadd.f32 %v1163, %v1235
        %v1253 = vadd.f32 %v1168, %v1235
        %v1254 = vadd.f32 %v1171, %v1235
        %v1255 = vadd.f32 %v1176, %v1235
        %v1256 = vadd.f32 %v1179, %v1235
        %v1257 = vadd.f32 %v1184, %v1235
        %v1258 = vadd.f32 %v1187, %v1235
        %v1259 = vadd.f32 %v1192, %v1235
        %v1260 = vadd.f32 %v1195, %v1235
        %v1261 = vadd.f32 %v1200, %v1235
        %v1262 = vadd.f32 %v1203, %v1235
        %v1263 = vadd.f32 %v1208, %v1235
        %v1264 = vadd.f32 %v1211, %v1235
        %v1265 = vadd.f32 %v1216, %v1235
        %v1266 = vadd.f32 %v1219, %v1235
        %v1267 = vadd.f32 %v1224, %v1235
        %v1268 = vadd.f32 %v1227, %v1235
        %v1269 = vmax.f32 %v1237, 0.0
        %v1270 = vmax.f32 %v1238, 0.0
        %v1271 = vmax.f32 %v1239, 0.0
        %v1272 = vmax.f32 %v1240, 0.0
        %v1273 = vmax.f32 %v1241, 0.0
        %v1274 = vmax.f32 %v1242, 0.0
        %v1275 = vmax.f32 %v1243, 0.0
        %v1276 = vmax.f32 %v1244, 0.0
        %v1277 = vmax.f32 %v1245, 0.0
        %v1278 = vmax.f32 %v1246, 0.0
        %v1279 = vmax.f32 %v1247, 0.0
        %v1280 = vmax.f32 %v1248, 0.0
        %v1281 = vmax.f32 %v1249, 0.0
        %v1282 = vmax.f32 %v1250, 0.0
        %v1283 = vmax.f32 %v1251, 0.0
        %v1284 = vmax.f32 %v1252, 0.0
        %v1285 = vmax.f32 %v1253, 0.0
        %v1286 = vmax.f32 %v1254, 0.0
        %v1287 = vmax.f32 %v1255, 0.0
        %v1288 = vmax.f32 %v1256, 0.0
        %v1289 = vmax.f32 %v1257, 0.0
        %v1290 = vmax.f32 %v1258, 0.0
        %v1291 = vmax.f32 %v1259, 0.0
        %v1292 = vmax.f32 %v1260, 0.0
        %v1293 = vmax.f32 %v1261, 0.0
        %v1294 = vmax.f32 %v1262, 0.0
        %v1295 = vmax.f32 %v1263, 0.0
        %v1296 = vmax.f32 %v1264, 0.0
        %v1297 = vmax.f32 %v1265, 0.0
        %v1298 = vmax.f32 %v1266, 0.0
        %v1299 = vmax.f32 %v1267, 0.0
        %v1300 = vmax.f32 %v1268, 0.0
        %v1301 = vld [vmem:[%s7] sm:$0x1]
        %v1303 = vlaneseq
        %v1304 = vshrl.u32 %v1303, 7
        %v1305 = vsub.s32 0, %v1304
        %v1306 = vrot.slane %v1301, %v1305
        %v1308 = vmul.f32 %v1269, %v1306
        %v1309 = vmul.f32 %v1270, %v1306
        %v1310 = vmul.f32 %v1271, %v1306
        %v1311 = vmul.f32 %v1272, %v1306
        %v1312 = vmul.f32 %v1273, %v1306
        %v1313 = vmul.f32 %v1274, %v1306
        %v1314 = vmul.f32 %v1275, %v1306
        %v1315 = vmul.f32 %v1276, %v1306
        %v1316 = vmul.f32 %v1277, %v1306
        %v1317 = vmul.f32 %v1278, %v1306
        %v1318 = vmul.f32 %v1279, %v1306
        %v1319 = vmul.f32 %v1280, %v1306
        %v1320 = vmul.f32 %v1281, %v1306
        %v1321 = vmul.f32 %v1282, %v1306
        %v1322 = vmul.f32 %v1283, %v1306
        %v1323 = vmul.f32 %v1284, %v1306
        %v1324 = vmul.f32 %v1285, %v1306
        %v1325 = vmul.f32 %v1286, %v1306
        %v1326 = vmul.f32 %v1287, %v1306
        %v1327 = vmul.f32 %v1288, %v1306
        %v1328 = vmul.f32 %v1289, %v1306
        %v1329 = vmul.f32 %v1290, %v1306
        %v1330 = vmul.f32 %v1291, %v1306
        %v1331 = vmul.f32 %v1292, %v1306
        %v1332 = vmul.f32 %v1293, %v1306
        %v1333 = vmul.f32 %v1294, %v1306
        %v1334 = vmul.f32 %v1295, %v1306
        %v1335 = vmul.f32 %v1296, %v1306
        %v1336 = vmul.f32 %v1297, %v1306
        %v1337 = vmul.f32 %v1298, %v1306
        %v1338 = vmul.f32 %v1299, %v1306
        %v1339 = vmul.f32 %v1300, %v1306
        %vm1340 = vcmask 408576
        %v1341 = vsel %vm1340, %v1308, 0.0
        %1342 = vadd.xlane.f32.xlu0 %v1341
        %v1343 = vpop.xlane.xlu0 %1342
        %v1344 = vsel %vm1340, %v1309, 0.0
        %1345 = vadd.xlane.f32.xlu0 %v1344
        %v1346 = vpop.xlane.xlu0 %1345
        %v1347 = vsel %vm1340, %v1310, 0.0
        %1348 = vadd.xlane.f32.xlu0 %v1347
        %v1349 = vpop.xlane.xlu0 %1348
        %v1350 = vsel %vm1340, %v1311, 0.0
        %1351 = vadd.xlane.f32.xlu0 %v1350
        %v1352 = vpop.xlane.xlu0 %1351
        %v1353 = vsel %vm1340, %v1312, 0.0
        %1354 = vadd.xlane.f32.xlu0 %v1353
        %v1355 = vpop.xlane.xlu0 %1354
        %v1356 = vsel %vm1340, %v1313, 0.0
        %1357 = vadd.xlane.f32.xlu0 %v1356
        %v1358 = vpop.xlane.xlu0 %1357
        %v1359 = vsel %vm1340, %v1314, 0.0
        %1360 = vadd.xlane.f32.xlu0 %v1359
        %v1361 = vpop.xlane.xlu0 %1360
        %v1362 = vsel %vm1340, %v1315, 0.0
        %1363 = vadd.xlane.f32.xlu0 %v1362
        %v1364 = vpop.xlane.xlu0 %1363
        %v1365 = vsel %vm1340, %v1316, 0.0
        %1366 = vadd.xlane.f32.xlu0 %v1365
        %v1367 = vpop.xlane.xlu0 %1366
        %v1368 = vsel %vm1340, %v1317, 0.0
        %1369 = vadd.xlane.f32.xlu0 %v1368
        %v1370 = vpop.xlane.xlu0 %1369
        %v1371 = vsel %vm1340, %v1318, 0.0
        %1372 = vadd.xlane.f32.xlu0 %v1371
        %v1373 = vpop.xlane.xlu0 %1372
        %v1374 = vsel %vm1340, %v1319, 0.0
        %1375 = vadd.xlane.f32.xlu0 %v1374
        %v1376 = vpop.xlane.xlu0 %1375
        %v1377 = vsel %vm1340, %v1320, 0.0
        %1378 = vadd.xlane.f32.xlu0 %v1377
        %v1379 = vpop.xlane.xlu0 %1378
        %v1380 = vsel %vm1340, %v1321, 0.0
        %1381 = vadd.xlane.f32.xlu0 %v1380
        %v1382 = vpop.xlane.xlu0 %1381
        %v1383 = vsel %vm1340, %v1322, 0.0
        %1384 = vadd.xlane.f32.xlu0 %v1383
        %v1385 = vpop.xlane.xlu0 %1384
        %v1386 = vsel %vm1340, %v1323, 0.0
        %1387 = vadd.xlane.f32.xlu0 %v1386
        %v1388 = vpop.xlane.xlu0 %1387
        %v1389 = vsel %vm1340, %v1324, 0.0
        %1390 = vadd.xlane.f32.xlu0 %v1389
        %v1391 = vpop.xlane.xlu0 %1390
        %v1392 = vsel %vm1340, %v1325, 0.0
        %1393 = vadd.xlane.f32.xlu0 %v1392
        %v1394 = vpop.xlane.xlu0 %1393
        %v1395 = vsel %vm1340, %v1326, 0.0
        %1396 = vadd.xlane.f32.xlu0 %v1395
        %v1397 = vpop.xlane.xlu0 %1396
        %v1398 = vsel %vm1340, %v1327, 0.0
        %1399 = vadd.xlane.f32.xlu0 %v1398
        %v1400 = vpop.xlane.xlu0 %1399
        %v1401 = vsel %vm1340, %v1328, 0.0
        %1402 = vadd.xlane.f32.xlu0 %v1401
        %v1403 = vpop.xlane.xlu0 %1402
        %v1404 = vsel %vm1340, %v1329, 0.0
        %1405 = vadd.xlane.f32.xlu0 %v1404
        %v1406 = vpop.xlane.xlu0 %1405
        %v1407 = vsel %vm1340, %v1330, 0.0
        %1408 = vadd.xlane.f32.xlu0 %v1407
        %v1409 = vpop.xlane.xlu0 %1408
        %v1410 = vsel %vm1340, %v1331, 0.0
        %1411 = vadd.xlane.f32.xlu0 %v1410
        %v1412 = vpop.xlane.xlu0 %1411
        %v1413 = vsel %vm1340, %v1332, 0.0
        %1414 = vadd.xlane.f32.xlu0 %v1413
        %v1415 = vpop.xlane.xlu0 %1414
        %v1416 = vsel %vm1340, %v1333, 0.0
        %1417 = vadd.xlane.f32.xlu0 %v1416
        %v1418 = vpop.xlane.xlu0 %1417
        %v1419 = vsel %vm1340, %v1334, 0.0
        %1420 = vadd.xlane.f32.xlu0 %v1419
        %v1421 = vpop.xlane.xlu0 %1420
        %v1422 = vsel %vm1340, %v1335, 0.0
        %1423 = vadd.xlane.f32.xlu0 %v1422
        %v1424 = vpop.xlane.xlu0 %1423
        %v1425 = vsel %vm1340, %v1336, 0.0
        %1426 = vadd.xlane.f32.xlu0 %v1425
        %v1427 = vpop.xlane.xlu0 %1426
        %v1428 = vsel %vm1340, %v1337, 0.0
        %1429 = vadd.xlane.f32.xlu0 %v1428
        %v1430 = vpop.xlane.xlu0 %1429
        %v1431 = vsel %vm1340, %v1338, 0.0
        %1432 = vadd.xlane.f32.xlu0 %v1431
        %v1433 = vpop.xlane.xlu0 %1432
        %v1434 = vsel %vm1340, %v1339, 0.0
        %1435 = vadd.xlane.f32.xlu0 %v1434
        %v1436 = vpop.xlane.xlu0 %1435
        %s1437 = sld [smem:[#allocation2]]
        %v1438 = vstv %s1437
        %v1439 = vadd.f32 %v1343, %v1438
        %v1440 = vadd.f32 %v1346, %v1438
        %v1441 = vadd.f32 %v1349, %v1438
        %v1442 = vadd.f32 %v1352, %v1438
        %v1443 = vadd.f32 %v1355, %v1438
        %v1444 = vadd.f32 %v1358, %v1438
        %v1445 = vadd.f32 %v1361, %v1438
        %v1446 = vadd.f32 %v1364, %v1438
        %v1447 = vadd.f32 %v1367, %v1438
        %v1448 = vadd.f32 %v1370, %v1438
        %v1449 = vadd.f32 %v1373, %v1438
        %v1450 = vadd.f32 %v1376, %v1438
        %v1451 = vadd.f32 %v1379, %v1438
        %v1452 = vadd.f32 %v1382, %v1438
        %v1453 = vadd.f32 %v1385, %v1438
        %v1454 = vadd.f32 %v1388, %v1438
        %v1455 = vadd.f32 %v1391, %v1438
        %v1456 = vadd.f32 %v1394, %v1438
        %v1457 = vadd.f32 %v1397, %v1438
        %v1458 = vadd.f32 %v1400, %v1438
        %v1459 = vadd.f32 %v1403, %v1438
        %v1460 = vadd.f32 %v1406, %v1438
        %v1461 = vadd.f32 %v1409, %v1438
        %v1462 = vadd.f32 %v1412, %v1438
        %v1463 = vadd.f32 %v1415, %v1438
        %v1464 = vadd.f32 %v1418, %v1438
        %v1465 = vadd.f32 %v1421, %v1438
        %v1466 = vadd.f32 %v1424, %v1438
        %v1467 = vadd.f32 %v1427, %v1438
        %v1468 = vadd.f32 %v1430, %v1438
        %v1469 = vadd.f32 %v1433, %v1438
        %v1470 = vadd.f32 %v1436, %v1438
        %v1471 = vld [vmem:[%s368] sm:$0xff]
        %v1472 = vld [vmem:[%s368 + $0x8] sm:$0xff]
        %v1473 = vlaneseq
        %v1474 = vand.u32 %v1473, 127
        %1475 = vset.pattern.permute.xlu0 0
        %1476 = vperm.xlu0 %1475, %v1471
        %v1477 = vpop.permute.xlu0 %1476
        %1478 = vset.pattern.permute.xlu0 0
        %1479 = vperm.xlu0 %1478, %v1472
        %v1480 = vpop.permute.xlu0 %1479
        %vm1481 = vcmp.lt.s32.totalorder %v1474, %v1477
        %vm1482 = vcmp.lt.s32.totalorder %v1474, %v1480
        %v1515 = vlaneseq
        %v1516 = vshrl.u32 %v1515, 7
        %v1517 = vsub.s32 %v1474, %v1516
        %v1518 = vrot.slane %v1439, %v1517
        %v1519 = vadd.s32 %v1474, 4294967288
        %v1520 = vlaneseq
        %v1521 = vshrl.u32 %v1520, 7
        %v1522 = vsub.s32 %v1519, %v1521
        %v1523 = vrot.slane %v1440, %v1522
        %vm1524 = vcmask 130112
        %v1525 = vsel %vm1524, %v1523, %v1518
        %v1526 = vlaneseq
        %v1527 = vshrl.u32 %v1526, 7
        %v1528 = vsub.s32 %v1474, %v1527
        %v1529 = vrot.slane %v1441, %v1528
        %v1530 = vlaneseq
        %v1531 = vshrl.u32 %v1530, 7
        %v1532 = vsub.s32 %v1519, %v1531
        %v1533 = vrot.slane %v1442, %v1532
        %v1534 = vsel %vm1524, %v1533, %v1529
        %v1535 = vlaneseq
        %v1536 = vshrl.u32 %v1535, 7
        %v1537 = vsub.s32 %v1474, %v1536
        %v1538 = vrot.slane %v1443, %v1537
        %v1539 = vlaneseq
        %v1540 = vshrl.u32 %v1539, 7
        %v1541 = vsub.s32 %v1519, %v1540
        %v1542 = vrot.slane %v1444, %v1541
        %v1543 = vsel %vm1524, %v1542, %v1538
        %v1544 = vlaneseq
        %v1545 = vshrl.u32 %v1544, 7
        %v1546 = vsub.s32 %v1474, %v1545
        %v1547 = vrot.slane %v1445, %v1546
        %v1548 = vlaneseq
        %v1549 = vshrl.u32 %v1548, 7
        %v1550 = vsub.s32 %v1519, %v1549
        %v1551 = vrot.slane %v1446, %v1550
        %v1552 = vsel %vm1524, %v1551, %v1547
        %v1553 = vlaneseq
        %v1554 = vshrl.u32 %v1553, 7
        %v1555 = vsub.s32 %v1474, %v1554
        %v1556 = vrot.slane %v1447, %v1555
        %v1557 = vlaneseq
        %v1558 = vshrl.u32 %v1557, 7
        %v1559 = vsub.s32 %v1519, %v1558
        %v1560 = vrot.slane %v1448, %v1559
        %v1561 = vsel %vm1524, %v1560, %v1556
        %v1562 = vlaneseq
        %v1563 = vshrl.u32 %v1562, 7
        %v1564 = vsub.s32 %v1474, %v1563
        %v1565 = vrot.slane %v1449, %v1564
        %v1566 = vlaneseq
        %v1567 = vshrl.u32 %v1566, 7
        %v1568 = vsub.s32 %v1519, %v1567
        %v1569 = vrot.slane %v1450, %v1568
        %v1570 = vsel %vm1524, %v1569, %v1565
        %v1571 = vlaneseq
        %v1572 = vshrl.u32 %v1571, 7
        %v1573 = vsub.s32 %v1474, %v1572
        %v1574 = vrot.slane %v1451, %v1573
        %v1575 = vlaneseq
        %v1576 = vshrl.u32 %v1575, 7
        %v1577 = vsub.s32 %v1519, %v1576
        %v1578 = vrot.slane %v1452, %v1577
        %v1579 = vsel %vm1524, %v1578, %v1574
        %v1580 = vlaneseq
        %v1581 = vshrl.u32 %v1580, 7
        %v1582 = vsub.s32 %v1474, %v1581
        %v1583 = vrot.slane %v1453, %v1582
        %v1584 = vlaneseq
        %v1585 = vshrl.u32 %v1584, 7
        %v1586 = vsub.s32 %v1519, %v1585
        %v1587 = vrot.slane %v1454, %v1586
        %v1588 = vsel %vm1524, %v1587, %v1583
        %v1589 = vlaneseq
        %v1590 = vshrl.u32 %v1589, 7
        %v1591 = vsub.s32 %v1474, %v1590
        %v1592 = vrot.slane %v1455, %v1591
        %v1593 = vlaneseq
        %v1594 = vshrl.u32 %v1593, 7
        %v1595 = vsub.s32 %v1519, %v1594
        %v1596 = vrot.slane %v1456, %v1595
        %v1597 = vsel %vm1524, %v1596, %v1592
        %v1598 = vlaneseq
        %v1599 = vshrl.u32 %v1598, 7
        %v1600 = vsub.s32 %v1474, %v1599
        %v1601 = vrot.slane %v1457, %v1600
        %v1602 = vlaneseq
        %v1603 = vshrl.u32 %v1602, 7
        %v1604 = vsub.s32 %v1519, %v1603
        %v1605 = vrot.slane %v1458, %v1604
        %v1606 = vsel %vm1524, %v1605, %v1601
        %v1607 = vlaneseq
        %v1608 = vshrl.u32 %v1607, 7
        %v1609 = vsub.s32 %v1474, %v1608
        %v1610 = vrot.slane %v1459, %v1609
        %v1611 = vlaneseq
        %v1612 = vshrl.u32 %v1611, 7
        %v1613 = vsub.s32 %v1519, %v1612
        %v1614 = vrot.slane %v1460, %v1613
        %v1615 = vsel %vm1524, %v1614, %v1610
        %v1616 = vlaneseq
        %v1617 = vshrl.u32 %v1616, 7
        %v1618 = vsub.s32 %v1474, %v1617
        %v1619 = vrot.slane %v1461, %v1618
        %v1620 = vlaneseq
        %v1621 = vshrl.u32 %v1620, 7
        %v1622 = vsub.s32 %v1519, %v1621
        %v1623 = vrot.slane %v1462, %v1622
        %v1624 = vsel %vm1524, %v1623, %v1619
        %v1625 = vlaneseq
        %v1626 = vshrl.u32 %v1625, 7
        %v1627 = vsub.s32 %v1474, %v1626
        %v1628 = vrot.slane %v1463, %v1627
        %v1629 = vlaneseq
        %v1630 = vshrl.u32 %v1629, 7
        %v1631 = vsub.s32 %v1519, %v1630
        %v1632 = vrot.slane %v1464, %v1631
        %v1633 = vsel %vm1524, %v1632, %v1628
        %v1634 = vlaneseq
        %v1635 = vshrl.u32 %v1634, 7
        %v1636 = vsub.s32 %v1474, %v1635
        %v1637 = vrot.slane %v1465, %v1636
        %v1638 = vlaneseq
        %v1639 = vshrl.u32 %v1638, 7
        %v1640 = vsub.s32 %v1519, %v1639
        %v1641 = vrot.slane %v1466, %v1640
        %v1642 = vsel %vm1524, %v1641, %v1637
        %v1643 = vlaneseq
        %v1644 = vshrl.u32 %v1643, 7
        %v1645 = vsub.s32 %v1474, %v1644
        %v1646 = vrot.slane %v1467, %v1645
        %v1647 = vlaneseq
        %v1648 = vshrl.u32 %v1647, 7
        %v1649 = vsub.s32 %v1519, %v1648
        %v1650 = vrot.slane %v1468, %v1649
        %v1651 = vsel %vm1524, %v1650, %v1646
        %v1652 = vlaneseq
        %v1653 = vshrl.u32 %v1652, 7
        %v1654 = vsub.s32 %v1474, %v1653
        %v1655 = vrot.slane %v1469, %v1654
        %v1656 = vlaneseq
        %v1657 = vshrl.u32 %v1656, 7
        %v1658 = vsub.s32 %v1519, %v1657
        %v1659 = vrot.slane %v1470, %v1658
        %v1660 = vsel %vm1524, %v1659, %v1655
        %vm1661 = vcmask 1041409
        %v1662 = vsel %vm1661, %v1534, %v1525
        %vm1663 = vcmask 1042434
        %v1664 = vsel %vm1663, %v1543, %v1662
        %vm1665 = vcmask 1043459
        %v1666 = vsel %vm1665, %v1552, %v1664
        %vm1667 = vcmask 1044484
        %v1668 = vsel %vm1667, %v1561, %v1666
        %vm1669 = vcmask 1045509
        %v1670 = vsel %vm1669, %v1570, %v1668
        %vm1671 = vcmask 1046534
        %v1672 = vsel %vm1671, %v1579, %v1670
        %vm1673 = vcmask 1047559
        %v1674 = vsel %vm1673, %v1588, %v1672
        %v1675 = vsel %vm1661, %v1606, %v1597
        %v1676 = vsel %vm1663, %v1615, %v1675
        %v1677 = vsel %vm1665, %v1624, %v1676
        %v1678 = vsel %vm1667, %v1633, %v1677
        %v1679 = vsel %vm1669, %v1642, %v1678
        %v1680 = vsel %vm1671, %v1651, %v1679
        %v1681 = vsel %vm1673, %v1660, %v1680
        %v1684 = vsel %vm1481, %v1674, -1e+30
        %v1685 = vsel %vm1482, %v1681, -1e+30
        %vm1686 = vcmask 130048
        %v1687 = vsel %vm1686, %v1684, -inf
        %1688 = vmax.xlane.f32.xlu0 %v1687
        %v1689 = vpop.xlane.xlu0 %1688
        %v1690 = vsel %vm1686, %v1685, -inf
        %1691 = vmax.xlane.f32.xlu0 %v1690
        %v1692 = vpop.xlane.xlu0 %1691
        %v1693 = vsub.f32 %v1684, %v1689
        %v1694 = vsub.f32 %v1685, %v1692
        %v1695 = vmul.f32 %v1693, 1.442695
        %v1696 = vpow.pop %v1695
        %v1697 = vmul.f32 %v1694, 1.442695
        %v1698 = vpow.pop %v1697
        %v1699 = vsel %vm1481, %v1696, 0.0
        %v1700 = vsel %vm1482, %v1698, 0.0
        %v1701 = vsel %vm1686, %v1699, 0.0
        %1702 = vadd.xlane.f32.xlu0 %v1701
        %v1703 = vpop.xlane.xlu0 %1702
        %v1704 = vsel %vm1686, %v1700, 0.0
        %1705 = vadd.xlane.f32.xlu0 %v1704
        %v1706 = vpop.xlane.xlu0 %1705
        %v1707 = vmax.f32 %v1703, 1e-30
        %v1708 = vmax.f32 %v1706, 1e-30
        %v1709 = vrcp.pop %v1707
        %v1710 = vrcp.pop %v1708
        %v1711 = vmul.f32 %v1699, %v1709
        %v1712 = vmul.f32 %v1700, %v1710
        %v1713 = vunpack.c.l.bf16 %v386
        %v1714 = vunpack.c.l.bf16 %v387
        %v1715 = vunpack.c.l.bf16 %v388
        %v1716 = vunpack.c.l.bf16 %v389
        %v1717 = vunpack.c.l.bf16 %v390
        %v1718 = vunpack.c.l.bf16 %v391
        %v1719 = vunpack.c.l.bf16 %v392
        %v1720 = vunpack.c.l.bf16 %v393
        %v1721 = vunpack.c.l.bf16 %v394
        %v1722 = vunpack.c.l.bf16 %v395
        %v1723 = vunpack.c.l.bf16 %v396
        %v1724 = vunpack.c.l.bf16 %v397
        %v1725 = vunpack.c.l.bf16 %v398
        %v1726 = vunpack.c.l.bf16 %v399
        %v1727 = vunpack.c.l.bf16 %v400
        %v1728 = vunpack.c.l.bf16 %v401
        %v1729 = vunpack.c.l.bf16 %v402
        %v1730 = vunpack.c.l.bf16 %v403
        %v1731 = vunpack.c.l.bf16 %v404
        %v1732 = vunpack.c.l.bf16 %v405
        %v1733 = vunpack.c.l.bf16 %v406
        %v1734 = vunpack.c.l.bf16 %v407
        %v1735 = vunpack.c.l.bf16 %v408
        %v1736 = vunpack.c.l.bf16 %v409
        %v1737 = vunpack.c.l.bf16 %v410
        %v1738 = vunpack.c.l.bf16 %v411
        %v1739 = vunpack.c.l.bf16 %v412
        %v1740 = vunpack.c.l.bf16 %v413
        %v1741 = vunpack.c.l.bf16 %v414
        %v1742 = vunpack.c.l.bf16 %v415
        %v1743 = vunpack.c.l.bf16 %v416
        %v1744 = vunpack.c.l.bf16 %v417
        %v1745 = vlaneseq
        %v1746 = vshrl.u32 %v1745, 7
        %v1747 = vsub.s32 0, %v1746
        %v1748 = vrot.slane %v1711, %v1747
        %1750 = vbcast.lane.b32.xlu0 %v1748, 256
        %v1751 = vpop.permute.xlu0 %1750
        %s1753 = sor.u32 256, 8
        %1754 = vbcast.lane.b32.xlu0 %v1748, %s1753
        %v1755 = vpop.permute.xlu0 %1754
        %v1756 = vlaneseq
        %v1757 = vshrl.u32 %v1756, 7
        %v1758 = vsub.s32 1, %v1757
        %v1759 = vrot.slane %v1711, %v1758
        %1761 = vbcast.lane.b32.xlu0 %v1759, 256
        %v1762 = vpop.permute.xlu0 %1761
        %s1764 = sor.u32 256, 8
        %1765 = vbcast.lane.b32.xlu0 %v1759, %s1764
        %v1766 = vpop.permute.xlu0 %1765
        %v1767 = vlaneseq
        %v1768 = vshrl.u32 %v1767, 7
        %v1769 = vsub.s32 2, %v1768
        %v1770 = vrot.slane %v1711, %v1769
        %1772 = vbcast.lane.b32.xlu0 %v1770, 256
        %v1773 = vpop.permute.xlu0 %1772
        %s1775 = sor.u32 256, 8
        %1776 = vbcast.lane.b32.xlu0 %v1770, %s1775
        %v1777 = vpop.permute.xlu0 %1776
        %v1778 = vlaneseq
        %v1779 = vshrl.u32 %v1778, 7
        %v1780 = vsub.s32 3, %v1779
        %v1781 = vrot.slane %v1711, %v1780
        %1783 = vbcast.lane.b32.xlu0 %v1781, 256
        %v1784 = vpop.permute.xlu0 %1783
        %s1786 = sor.u32 256, 8
        %1787 = vbcast.lane.b32.xlu0 %v1781, %s1786
        %v1788 = vpop.permute.xlu0 %1787
        %v1789 = vlaneseq
        %v1790 = vshrl.u32 %v1789, 7
        %v1791 = vsub.s32 4, %v1790
        %v1792 = vrot.slane %v1711, %v1791
        %1794 = vbcast.lane.b32.xlu0 %v1792, 256
        %v1795 = vpop.permute.xlu0 %1794
        %s1797 = sor.u32 256, 8
        %1798 = vbcast.lane.b32.xlu0 %v1792, %s1797
        %v1799 = vpop.permute.xlu0 %1798
        %v1800 = vlaneseq
        %v1801 = vshrl.u32 %v1800, 7
        %v1802 = vsub.s32 5, %v1801
        %v1803 = vrot.slane %v1711, %v1802
        %1805 = vbcast.lane.b32.xlu0 %v1803, 256
        %v1806 = vpop.permute.xlu0 %1805
        %s1808 = sor.u32 256, 8
        %1809 = vbcast.lane.b32.xlu0 %v1803, %s1808
        %v1810 = vpop.permute.xlu0 %1809
        %v1811 = vlaneseq
        %v1812 = vshrl.u32 %v1811, 7
        %v1813 = vsub.s32 6, %v1812
        %v1814 = vrot.slane %v1711, %v1813
        %1816 = vbcast.lane.b32.xlu0 %v1814, 256
        %v1817 = vpop.permute.xlu0 %1816
        %s1819 = sor.u32 256, 8
        %1820 = vbcast.lane.b32.xlu0 %v1814, %s1819
        %v1821 = vpop.permute.xlu0 %1820
        %v1822 = vlaneseq
        %v1823 = vshrl.u32 %v1822, 7
        %v1824 = vsub.s32 7, %v1823
        %v1825 = vrot.slane %v1711, %v1824
        %1827 = vbcast.lane.b32.xlu0 %v1825, 256
        %v1828 = vpop.permute.xlu0 %1827
        %s1830 = sor.u32 256, 8
        %1831 = vbcast.lane.b32.xlu0 %v1825, %s1830
        %v1832 = vpop.permute.xlu0 %1831
        %v1833 = vlaneseq
        %v1834 = vshrl.u32 %v1833, 7
        %v1835 = vsub.s32 0, %v1834
        %v1836 = vrot.slane %v1712, %v1835
        %1838 = vbcast.lane.b32.xlu0 %v1836, 256
        %v1839 = vpop.permute.xlu0 %1838
        %s1841 = sor.u32 256, 8
        %1842 = vbcast.lane.b32.xlu0 %v1836, %s1841
        %v1843 = vpop.permute.xlu0 %1842
        %v1844 = vlaneseq
        %v1845 = vshrl.u32 %v1844, 7
        %v1846 = vsub.s32 1, %v1845
        %v1847 = vrot.slane %v1712, %v1846
        %1849 = vbcast.lane.b32.xlu0 %v1847, 256
        %v1850 = vpop.permute.xlu0 %1849
        %s1852 = sor.u32 256, 8
        %1853 = vbcast.lane.b32.xlu0 %v1847, %s1852
        %v1854 = vpop.permute.xlu0 %1853
        %v1855 = vlaneseq
        %v1856 = vshrl.u32 %v1855, 7
        %v1857 = vsub.s32 2, %v1856
        %v1858 = vrot.slane %v1712, %v1857
        %1860 = vbcast.lane.b32.xlu0 %v1858, 256
        %v1861 = vpop.permute.xlu0 %1860
        %s1863 = sor.u32 256, 8
        %1864 = vbcast.lane.b32.xlu0 %v1858, %s1863
        %v1865 = vpop.permute.xlu0 %1864
        %v1866 = vlaneseq
        %v1867 = vshrl.u32 %v1866, 7
        %v1868 = vsub.s32 3, %v1867
        %v1869 = vrot.slane %v1712, %v1868
        %1871 = vbcast.lane.b32.xlu0 %v1869, 256
        %v1872 = vpop.permute.xlu0 %1871
        %s1874 = sor.u32 256, 8
        %1875 = vbcast.lane.b32.xlu0 %v1869, %s1874
        %v1876 = vpop.permute.xlu0 %1875
        %v1877 = vlaneseq
        %v1878 = vshrl.u32 %v1877, 7
        %v1879 = vsub.s32 4, %v1878
        %v1880 = vrot.slane %v1712, %v1879
        %1882 = vbcast.lane.b32.xlu0 %v1880, 256
        %v1883 = vpop.permute.xlu0 %1882
        %s1885 = sor.u32 256, 8
        %1886 = vbcast.lane.b32.xlu0 %v1880, %s1885
        %v1887 = vpop.permute.xlu0 %1886
        %v1888 = vlaneseq
        %v1889 = vshrl.u32 %v1888, 7
        %v1890 = vsub.s32 5, %v1889
        %v1891 = vrot.slane %v1712, %v1890
        %1893 = vbcast.lane.b32.xlu0 %v1891, 256
        %v1894 = vpop.permute.xlu0 %1893
        %s1896 = sor.u32 256, 8
        %1897 = vbcast.lane.b32.xlu0 %v1891, %s1896
        %v1898 = vpop.permute.xlu0 %1897
        %v1899 = vlaneseq
        %v1900 = vshrl.u32 %v1899, 7
        %v1901 = vsub.s32 6, %v1900
        %v1902 = vrot.slane %v1712, %v1901
        %1904 = vbcast.lane.b32.xlu0 %v1902, 256
        %v1905 = vpop.permute.xlu0 %1904
        %s1907 = sor.u32 256, 8
        %1908 = vbcast.lane.b32.xlu0 %v1902, %s1907
        %v1909 = vpop.permute.xlu0 %1908
        %v1910 = vlaneseq
        %v1911 = vshrl.u32 %v1910, 7
        %v1912 = vsub.s32 7, %v1911
        %v1913 = vrot.slane %v1712, %v1912
        %1915 = vbcast.lane.b32.xlu0 %v1913, 256
        %v1916 = vpop.permute.xlu0 %1915
        %s1918 = sor.u32 256, 8
        %1919 = vbcast.lane.b32.xlu0 %v1913, %s1918
        %v1920 = vpop.permute.xlu0 %1919
        %v1921 = vmul.f32 %v1713, %v1751
        %v1922 = vmul.f32 %v1714, %v1755
        %v1923 = vmul.f32 %v1715, %v1762
        %v1924 = vmul.f32 %v1716, %v1766
        %v1925 = vmul.f32 %v1717, %v1773
        %v1926 = vmul.f32 %v1718, %v1777
        %v1927 = vmul.f32 %v1719, %v1784
        %v1928 = vmul.f32 %v1720, %v1788
        %v1929 = vmul.f32 %v1721, %v1795
        %v1930 = vmul.f32 %v1722, %v1799
        %v1931 = vmul.f32 %v1723, %v1806
        %v1932 = vmul.f32 %v1724, %v1810
        %v1933 = vmul.f32 %v1725, %v1817
        %v1934 = vmul.f32 %v1726, %v1821
        %v1935 = vmul.f32 %v1727, %v1828
        %v1936 = vmul.f32 %v1728, %v1832
        %v1937 = vmul.f32 %v1729, %v1839
        %v1938 = vmul.f32 %v1730, %v1843
        %v1939 = vmul.f32 %v1731, %v1850
        %v1940 = vmul.f32 %v1732, %v1854
        %v1941 = vmul.f32 %v1733, %v1861
        %v1942 = vmul.f32 %v1734, %v1865
        %v1943 = vmul.f32 %v1735, %v1872
        %v1944 = vmul.f32 %v1736, %v1876
        %v1945 = vmul.f32 %v1737, %v1883
        %v1946 = vmul.f32 %v1738, %v1887
        %v1947 = vmul.f32 %v1739, %v1894
        %v1948 = vmul.f32 %v1740, %v1898
        %v1949 = vmul.f32 %v1741, %v1905
        %v1950 = vmul.f32 %v1742, %v1909
        %v1951 = vmul.f32 %v1743, %v1916
        %v1952 = vmul.f32 %v1744, %v1920
        %v1953 = vsel %vm546, %v1921, 0.0
        %v1954 = vsel %vm546, %v1922, 0.0
        %v1955 = vadd.f32 %v1953, %v1954
        %v1956 = vrot.slane %v1955, 4
        %v1957 = vadd.f32 %v1955, %v1956
        %v1958 = vrot.slane %v1957, 2
        %v1959 = vadd.f32 %v1957, %v1958
        %v1960 = vrot.slane %v1959, 1
        %v1961 = vadd.f32 %v1959, %v1960
        %v1962 = vsel %vm546, %v1923, 0.0
        %v1963 = vsel %vm546, %v1924, 0.0
        %v1964 = vadd.f32 %v1962, %v1963
        %v1965 = vrot.slane %v1964, 4
        %v1966 = vadd.f32 %v1964, %v1965
        %v1967 = vrot.slane %v1966, 2
        %v1968 = vadd.f32 %v1966, %v1967
        %v1969 = vrot.slane %v1968, 1
        %v1970 = vadd.f32 %v1968, %v1969
        %v1971 = vsel %vm546, %v1925, 0.0
        %v1972 = vsel %vm546, %v1926, 0.0
        %v1973 = vadd.f32 %v1971, %v1972
        %v1974 = vrot.slane %v1973, 4
        %v1975 = vadd.f32 %v1973, %v1974
        %v1976 = vrot.slane %v1975, 2
        %v1977 = vadd.f32 %v1975, %v1976
        %v1978 = vrot.slane %v1977, 1
        %v1979 = vadd.f32 %v1977, %v1978
        %v1980 = vsel %vm546, %v1927, 0.0
        %v1981 = vsel %vm546, %v1928, 0.0
        %v1982 = vadd.f32 %v1980, %v1981
        %v1983 = vrot.slane %v1982, 4
        %v1984 = vadd.f32 %v1982, %v1983
        %v1985 = vrot.slane %v1984, 2
        %v1986 = vadd.f32 %v1984, %v1985
        %v1987 = vrot.slane %v1986, 1
        %v1988 = vadd.f32 %v1986, %v1987
        %v1989 = vsel %vm546, %v1929, 0.0
        %v1990 = vsel %vm546, %v1930, 0.0
        %v1991 = vadd.f32 %v1989, %v1990
        %v1992 = vrot.slane %v1991, 4
        %v1993 = vadd.f32 %v1991, %v1992
        %v1994 = vrot.slane %v1993, 2
        %v1995 = vadd.f32 %v1993, %v1994
        %v1996 = vrot.slane %v1995, 1
        %v1997 = vadd.f32 %v1995, %v1996
        %v1998 = vsel %vm546, %v1931, 0.0
        %v1999 = vsel %vm546, %v1932, 0.0
        %v2000 = vadd.f32 %v1998, %v1999
        %v2001 = vrot.slane %v2000, 4
        %v2002 = vadd.f32 %v2000, %v2001
        %v2003 = vrot.slane %v2002, 2
        %v2004 = vadd.f32 %v2002, %v2003
        %v2005 = vrot.slane %v2004, 1
        %v2006 = vadd.f32 %v2004, %v2005
        %v2007 = vsel %vm546, %v1933, 0.0
        %v2008 = vsel %vm546, %v1934, 0.0
        %v2009 = vadd.f32 %v2007, %v2008
        %v2010 = vrot.slane %v2009, 4
        %v2011 = vadd.f32 %v2009, %v2010
        %v2012 = vrot.slane %v2011, 2
        %v2013 = vadd.f32 %v2011, %v2012
        %v2014 = vrot.slane %v2013, 1
        %v2015 = vadd.f32 %v2013, %v2014
        %v2016 = vsel %vm546, %v1935, 0.0
        %v2017 = vsel %vm546, %v1936, 0.0
        %v2018 = vadd.f32 %v2016, %v2017
        %v2019 = vrot.slane %v2018, 4
        %v2020 = vadd.f32 %v2018, %v2019
        %v2021 = vrot.slane %v2020, 2
        %v2022 = vadd.f32 %v2020, %v2021
        %v2023 = vrot.slane %v2022, 1
        %v2024 = vadd.f32 %v2022, %v2023
        %v2025 = vsel %vm546, %v1937, 0.0
        %v2026 = vsel %vm546, %v1938, 0.0
        %v2027 = vadd.f32 %v2025, %v2026
        %v2028 = vrot.slane %v2027, 4
        %v2029 = vadd.f32 %v2027, %v2028
        %v2030 = vrot.slane %v2029, 2
        %v2031 = vadd.f32 %v2029, %v2030
        %v2032 = vrot.slane %v2031, 1
        %v2033 = vadd.f32 %v2031, %v2032
        %v2034 = vsel %vm546, %v1939, 0.0
        %v2035 = vsel %vm546, %v1940, 0.0
        %v2036 = vadd.f32 %v2034, %v2035
        %v2037 = vrot.slane %v2036, 4
        %v2038 = vadd.f32 %v2036, %v2037
        %v2039 = vrot.slane %v2038, 2
        %v2040 = vadd.f32 %v2038, %v2039
        %v2041 = vrot.slane %v2040, 1
        %v2042 = vadd.f32 %v2040, %v2041
        %v2043 = vsel %vm546, %v1941, 0.0
        %v2044 = vsel %vm546, %v1942, 0.0
        %v2045 = vadd.f32 %v2043, %v2044
        %v2046 = vrot.slane %v2045, 4
        %v2047 = vadd.f32 %v2045, %v2046
        %v2048 = vrot.slane %v2047, 2
        %v2049 = vadd.f32 %v2047, %v2048
        %v2050 = vrot.slane %v2049, 1
        %v2051 = vadd.f32 %v2049, %v2050
        %v2052 = vsel %vm546, %v1943, 0.0
        %v2053 = vsel %vm546, %v1944, 0.0
        %v2054 = vadd.f32 %v2052, %v2053
        %v2055 = vrot.slane %v2054, 4
        %v2056 = vadd.f32 %v2054, %v2055
        %v2057 = vrot.slane %v2056, 2
        %v2058 = vadd.f32 %v2056, %v2057
        %v2059 = vrot.slane %v2058, 1
        %v2060 = vadd.f32 %v2058, %v2059
        %v2061 = vsel %vm546, %v1945, 0.0
        %v2062 = vsel %vm546, %v1946, 0.0
        %v2063 = vadd.f32 %v2061, %v2062
        %v2064 = vrot.slane %v2063, 4
        %v2065 = vadd.f32 %v2063, %v2064
        %v2066 = vrot.slane %v2065, 2
        %v2067 = vadd.f32 %v2065, %v2066
        %v2068 = vrot.slane %v2067, 1
        %v2069 = vadd.f32 %v2067, %v2068
        %v2070 = vsel %vm546, %v1947, 0.0
        %v2071 = vsel %vm546, %v1948, 0.0
        %v2072 = vadd.f32 %v2070, %v2071
        %v2073 = vrot.slane %v2072, 4
        %v2074 = vadd.f32 %v2072, %v2073
        %v2075 = vrot.slane %v2074, 2
        %v2076 = vadd.f32 %v2074, %v2075
        %v2077 = vrot.slane %v2076, 1
        %v2078 = vadd.f32 %v2076, %v2077
        %v2079 = vsel %vm546, %v1949, 0.0
        %v2080 = vsel %vm546, %v1950, 0.0
        %v2081 = vadd.f32 %v2079, %v2080
        %v2082 = vrot.slane %v2081, 4
        %v2083 = vadd.f32 %v2081, %v2082
        %v2084 = vrot.slane %v2083, 2
        %v2085 = vadd.f32 %v2083, %v2084
        %v2086 = vrot.slane %v2085, 1
        %v2087 = vadd.f32 %v2085, %v2086
        %v2088 = vsel %vm546, %v1951, 0.0
        %v2089 = vsel %vm546, %v1952, 0.0
        %v2090 = vadd.f32 %v2088, %v2089
        %v2091 = vrot.slane %v2090, 4
        %v2092 = vadd.f32 %v2090, %v2091
        %v2093 = vrot.slane %v2092, 2
        %v2094 = vadd.f32 %v2092, %v2093
        %v2095 = vrot.slane %v2094, 1
        %v2096 = vadd.f32 %v2094, %v2095
        %v2113 = vsel %vm1661, %v1970, %v1961
        %v2114 = vsel %vm1663, %v1979, %v2113
        %v2115 = vsel %vm1665, %v1988, %v2114
        %v2116 = vsel %vm1667, %v1997, %v2115
        %v2117 = vsel %vm1669, %v2006, %v2116
        %v2118 = vsel %vm1671, %v2015, %v2117
        %v2119 = vsel %vm1673, %v2024, %v2118
        %v2120 = vsel %vm1661, %v2042, %v2033
        %v2121 = vsel %vm1663, %v2051, %v2120
        %v2122 = vsel %vm1665, %v2060, %v2121
        %v2123 = vsel %vm1667, %v2069, %v2122
        %v2124 = vsel %vm1669, %v2078, %v2123
        %v2125 = vsel %vm1671, %v2087, %v2124
        %v2126 = vsel %vm1673, %v2096, %v2125
        %2129 = vst.msk [vmem:[%s363] sm:$0xff] %vm546, %v2119
        %2130 = vst.msk [vmem:[%s363 + $0x8] sm:$0xff] %vm546, %v2126
        %s2131 = sand.u32 %s236, 1
        %s2132 = scalar_lea.sflag [#allocation4], %s2131
        %s2133 = sand.u32 %s236, 1
        %s2134 = smul.addr %s2133, 16
        %s2135 = scalar_lea.vmem [#allocation3], %s2134
        // Predicated region
        $region57: #{tpu_custom_call.1} parent=55 // pred_check
          %p2136 = pneg %p246
        $region58: #{tpu_custom_call.1} parent=55 // pred_check_branch
          %2138 = sbr.rel (%p2136) target = $region60
        $region59: #{tpu_custom_call.1} parent=55 // pred_region
          %s2139 = smul.u32 2, %s24
          %s2141 = ssub.s32 256, 256
          %2142 = vsyncadd %s2132, %s2141
          %s2143 = smul.addr %s2139, 128
          %s2144 = scalar_lea.hbm %s9, %s2143
          %s2145 = sshll.u32 %s2135, 4
          %s2146 = int_to_ptr.vmem [resolvable:$true] %s2145
          %2151 = dma.vmem_to_hbm [thread:$0]  %s2146, 256, %s2144, %s2132, 128, 128, 8
        $region60: #{tpu_custom_call.1} parent=55 // pred_fallthru
          _
      $region56: #{tpu_custom_call.1} parent=5 // pred_fallthru
        _
      %p2152 = scmp.le.s32.totalorder 2, %s19
      // Predicated region
      $region61: #{tpu_custom_call.1} parent=5 // pred_check
        %p2153 = pneg %p2152
      $region62: #{tpu_custom_call.1} parent=5 // pred_check_branch
        %2155 = sbr.rel (%p2153) target = $region64
      $region63: #{tpu_custom_call.1} parent=5 // pred_region
        %s2156 = ssub.s32 %s19, 2
        // Predicated region
        $region65: #{tpu_custom_call.1} parent=63 // pred_check
          %p2157 = pneg %p252
        $region66: #{tpu_custom_call.1} parent=63 // pred_check_branch
          %2159 = sbr.rel (%p2157) target = $region68
        $region67: #{tpu_custom_call.1} parent=63 // pred_region
          %s2160 = sand.u32 %s237, 1
          %s2161 = scalar_lea.sflag [#allocation4], %s2160
          %s2162 = sand.u32 %s237, 1
          %s2163 = smul.addr %s2162, 16
          %s2164 = scalar_lea.vmem [#allocation3], %s2163
          %2165 = dma.done %s2161, 256
        $region68: #{tpu_custom_call.1} parent=63 // pred_fallthru
          _
      $region64: #{tpu_custom_call.1} parent=5 // pred_fallthru
        _
    $region6: #{tpu_custom_call.1} parent=1 // loop_footer
      %s23 = sadd.s32 1, %s19
    $region7: #{tpu_custom_call.1} parent=1 // loop_footer_branch
      %18 = sbr.rel target = $region3
    $region8: #{tpu_custom_call.1} parent=1 // loop_exit
      _
    %2166 = vsyncpa [#allocation4], 1
    %s2167 = scalar_lea.sflag [#allocation4], 1
    %2168 = vsyncpa %s2167, 1

</llo_original>
